<compile_context>
chip_gen: v7x
topology: tpu7x:2x2x1
jax: 0.10.0
libtpu: 0.0.40
codegen_flags: <defaults>
</compile_context>

<pallas_src>
import numpy as np

import jax
import jax.numpy as jnp
from jax import lax
from jax.experimental import pallas as pl
from jax.experimental.pallas import tpu as pltpu


# ----------------------------------------------------------------------------
# Helpers
# ----------------------------------------------------------------------------
def _layer_dims(H, W, K, S, P):
    Ho = (H - 1) * S - 2 * P + K
    Wo = (W - 1) * S - 2 * P + K
    assert Ho > 0 and Wo > 0
    return Ho, Wo


# ----------------------------------------------------------------------------
# The single fused decoder kernel (generated per static config)
# ----------------------------------------------------------------------------
def _make_kernel(n_layers, batch_norm, eps):
    eps = float(eps)

    def kernel(*refs):
        # refs = (x, [A_l, B_l, (M_l, gamma_l, beta_l) | (bias_l)] * n_layers, out)
        x_ref, o_ref = refs[0], refs[-1]
        h = x_ref[...]                                   # (Cin*H, N*W) f32
        idx = 1
        for layer in range(n_layers):
            a_ref, b_ref = refs[idx], refs[idx + 1]
            idx += 2
            K = a_ref.shape[0]
            # ConvTranspose2d as sum_dj A_dj @ (h @ B_dj): 2*K small MXU dots;
            # dilation / padding / boundary clipping are baked into A/B.
            z = jnp.dot(h, b_ref[0], preferred_element_type=jnp.float32)
            y = jnp.dot(a_ref[0], z, preferred_element_type=jnp.float32)
            for dj in range(1, K):
                z = jnp.dot(h, b_ref[dj], preferred_element_type=jnp.float32)
                y = y + jnp.dot(a_ref[dj], z, preferred_element_type=jnp.float32)

            is_last = layer == n_layers - 1
            if batch_norm and not is_last:
                m_ref, g_ref, be_ref = refs[idx], refs[idx + 1], refs[idx + 2]
                idx += 3
                # Training-mode BatchNorm2d, centered two-pass batch stats.
                # M is the per-channel block-averaging matrix (includes 1/count),
                # so mean/var land row-expanded with no reshape needed.
                t = jnp.dot(m_ref[...], y, preferred_element_type=jnp.float32)
                mean_r = jnp.sum(t, axis=1, keepdims=True)        # E[y] per row
                yc = y - mean_r
                v = jnp.dot(m_ref[...], yc * yc,
                            preferred_element_type=jnp.float32)
                var_r = jnp.sum(v, axis=1, keepdims=True)         # biased Var[y]
                scale_r = g_ref[...] * lax.rsqrt(var_r + eps)
                h = jnp.maximum(yc * scale_r + be_ref[...], 0.0)  # ReLU
            else:
                bias_ref = refs[idx]
                idx += 1
                y = y + bias_ref[...]
                h = jax.nn.sigmoid(y) if is_last else jnp.maximum(y, 0.0)
        o_ref[...] = h

    return kernel


# ----------------------------------------------------------------------------
# One-time host-side parameter relayout:
#   A_l : (K, Cout*Ho, Cin*H)   row operator (channel contraction + row scatter)
#   B_l : (K, N*W,    N*Wo)     column scatter, block-diagonal over the batch
#   M_l : (Cout*Ho, Cout*Ho)    per-channel block averaging (BN layers only)
#   gamma/beta/bias             row-expanded to (Cout*Ho, 1)
# ----------------------------------------------------------------------------
def prepare_params(raw_params, channels, kernels, strides, paddings,
                   batch_norm, N, H, W):
    n_layers = len(channels) - 1
    ops = []
    h_dim, w_dim = H, W
    for i in range(n_layers):
        Cin, Cout = channels[i], channels[i + 1]
        K, S, P = kernels[i], strides[i], paddings[i]
        Ho, Wo = _layer_dims(h_dim, w_dim, K, S, P)
        w = np.asarray(raw_params[f"w{i}"], np.float32)          # (Cin,Cout,K,K)

        # Row operator:  A_dj[co*Ho + r, ci*H + i] = w[ci, co, r - S*i + P, dj]
        A5 = np.zeros((K, Cout, Ho, Cin, h_dim), np.float32)
        for dj in range(K):
            for di in range(K):
                for ii in range(h_dim):
                    r = S * ii + di - P
                    if 0 <= r < Ho:
                        A5[dj, :, r, :, ii] = w[:, :, di, dj].T   # (Cout, Cin)
        A = jnp.asarray(A5.reshape(K, Cout * Ho, Cin * h_dim))

        # Column operator: B_dj[j, c] = [c == S*j + dj - P], block-diag over N.
        Bs = np.zeros((K, w_dim, Wo), np.float32)
        for dj in range(K):
            for jj in range(w_dim):
                c = S * jj + dj - P
                if 0 <= c < Wo:
                    Bs[dj, jj, c] = 1.0
        B = jnp.asarray(np.stack(
            [np.kron(np.eye(N, dtype=np.float32), Bs[dj]) for dj in range(K)]))

        layer_ops = [A, B]
        is_last = i == n_layers - 1
        if batch_norm and not is_last:
            count = Ho * N * Wo
            M = np.kron(np.eye(Cout, dtype=np.float32),
                        np.ones((Ho, Ho), np.float32)) / np.float32(count)
            gamma_rows = np.repeat(
                np.asarray(raw_params[f"gamma{i}"], np.float32), Ho)[:, None]
            beta_rows = np.repeat(
                np.asarray(raw_params[f"beta{i}"], np.float32), Ho)[:, None]
            # Conv bias intentionally omitted: it cancels exactly under
            # training-mode BatchNorm (batch statistics).
            layer_ops += [jnp.asarray(M), jnp.asarray(gamma_rows),
                          jnp.asarray(beta_rows)]
        else:
            bias_rows = np.repeat(
                np.asarray(raw_params[f"b{i}"], np.float32), Ho)[:, None]
            layer_ops += [jnp.asarray(bias_rows)]

        ops += layer_ops
        h_dim, w_dim = Ho, Wo
    return ops


# ----------------------------------------------------------------------------
# Forward builder: one gridless pallas_call for the whole decoder.
# ----------------------------------------------------------------------------
def make_decoder_forward(channels, kernels, strides, paddings, batch_norm,
                         N, H, W, eps=1e-5):
    n_layers = len(channels) - 1
    h_dim, w_dim = H, W
    for i in range(n_layers):
        h_dim, w_dim = _layer_dims(h_dim, w_dim, kernels[i], strides[i],
                                   paddings[i])
    Ho_last, Wo_last = h_dim, w_dim
    Cin0, Cout_last = channels[0], channels[-1]
    kernel = _make_kernel(n_layers, batch_norm, eps)
    vmem_spec = pl.BlockSpec(memory_space=pltpu.MemorySpace.VMEM)

    def forward(x_nchw, ops):
        # Boundary glue only: NCHW -> (Cin*H, N*W) row/col layout.
        x2d = jnp.transpose(x_nchw, (1, 2, 0, 3)).reshape(Cin0 * H, N * W)
        x2d = x2d.astype(jnp.float32)
        out = pl.pallas_call(
            kernel,
            out_shape=jax.ShapeDtypeStruct(
                (Cout_last * Ho_last, N * Wo_last), jnp.float32),
            in_specs=[vmem_spec] * (1 + len(ops)),
            out_specs=vmem_spec,
        )(x2d, *ops)
        # (Cout*Ho, N*Wo) -> NCHW
        out4 = out.reshape(Cout_last, Ho_last, N, Wo_last)
        return jnp.transpose(out4, (2, 0, 1, 3))

    return forward


# ----------------------------------------------------------------------------
# Pure-JAX reference (correctness check only)
# ----------------------------------------------------------------------------
def decoder_reference(x_nchw, raw_params, channels, kernels, strides, paddings,
                      batch_norm, eps=1e-5):
    h = jnp.transpose(x_nchw, (0, 2, 3, 1)).astype(jnp.float32)  # NCHW -> NHWC
    n_layers = len(channels) - 1
    for i in range(n_layers):
        w, b = raw_params[f"w{i}"], raw_params[f"b{i}"]
        K, S, P = kernels[i], strides[i], paddings[i]
        w_hwio = jnp.transpose(w[:, :, ::-1, ::-1], (2, 3, 0, 1))
        y = lax.conv_general_dilated(
            h, w_hwio, window_strides=(1, 1),
            padding=[(K - 1 - P, K - 1 - P)] * 2, lhs_dilation=(S, S),
            dimension_numbers=("NHWC", "HWIO", "NHWC"),
            precision=lax.Precision.HIGHEST) + b
        is_last = i == n_layers - 1
        if batch_norm and not is_last:
            mean = jnp.mean(y, axis=(0, 1, 2), keepdims=True)
            var = jnp.mean((y - mean) ** 2, axis=(0, 1, 2), keepdims=True)
            y = (y - mean) * lax.rsqrt(var + eps)
            y = y * raw_params[f"gamma{i}"] + raw_params[f"beta{i}"]
        y = jax.nn.sigmoid(y) if is_last else jnp.maximum(y, 0.0)
        h = y
    return jnp.transpose(h, (0, 3, 1, 2))


# ----------------------------------------------------------------------------
if __name__ == "__main__":
    # Decoder config (internal_activation=ReLU, output_activation=Sigmoid)
    channels = [8, 4, 3]
    kernels = [4, 4]
    strides = [2, 2]
    paddings = [1, 1]
    batch_norm = True
    N, H, W = 2, 8, 8

    key = jax.random.PRNGKey(0)
    raw = {}
    for i in range(len(channels) - 1):
        cin, cout, k = channels[i], channels[i + 1], kernels[i]
        key, kw, kb, kg, kbe = jax.random.split(key, 5)
        raw[f"w{i}"] = 0.1 * jax.random.normal(kw, (cin, cout, k, k), jnp.float32)
        raw[f"b{i}"] = 0.1 * jax.random.normal(kb, (cout,), jnp.float32)
        if batch_norm and i < len(channels) - 2:
            raw[f"gamma{i}"] = 1.0 + 0.1 * jax.random.normal(kg, (cout,), jnp.float32)
            raw[f"beta{i}"] = 0.1 * jax.random.normal(kbe, (cout,), jnp.float32)

    key, kx = jax.random.split(key)
    x = jax.random.normal(kx, (N, channels[0], H, W), jnp.float32)  # NCHW

    ops = prepare_params(raw, channels, kernels, strides, paddings,
                         batch_norm, N, H, W)
    fwd = jax.jit(make_decoder_forward(channels, kernels, strides, paddings,
                                       batch_norm, N, H, W))
    out = jax.block_until_ready(fwd(x, ops))
    assert out.shape == (N, channels[-1], 32, 32), out.shape

    ref = decoder_reference(x, raw, channels, kernels, strides, paddings,
                            batch_norm)
    err = float(jnp.max(jnp.abs(out - ref)))
    assert err < 1e-3, f"max abs error {err}"

    print("KERNEL_OK")
</pallas_src>

<mosaic_0001>
module attributes {stable_mosaic.version = 11 : i64} {
  func.func @kernel(%arg0: memref<64x16xf32, #tpu.memory_space<vmem>>, %arg1: memref<4x64x64xf32, #tpu.memory_space<vmem>>, %arg2: memref<4x16x32xf32, #tpu.memory_space<vmem>>, %arg3: memref<64x64xf32, #tpu.memory_space<vmem>>, %arg4: memref<64x1xf32, #tpu.memory_space<vmem>>, %arg5: memref<64x1xf32, #tpu.memory_space<vmem>>, %arg6: memref<4x96x64xf32, #tpu.memory_space<vmem>>, %arg7: memref<4x32x64xf32, #tpu.memory_space<vmem>>, %arg8: memref<96x1xf32, #tpu.memory_space<vmem>>, %arg9: memref<96x64xf32, #tpu.memory_space<vmem>>) attributes {dimension_semantics = [], scalar_prefetch = 0 : i64, scratch_operands = 0 : i64, tpu.core_type = #tpu.core_type<tc>} {
    %c0 = arith.constant 0 : index
    %c0_0 = arith.constant 0 : index
    %0 = vector.load %arg0[%c0, %c0_0] : memref<64x16xf32, #tpu.memory_space<vmem>>, vector<64x16xf32>
    %c0_1 = arith.constant 0 : index
    %c0_2 = arith.constant 0 : index
    %c0_3 = arith.constant 0 : index
    %1 = vector.load %arg2[%c0_1, %c0_2, %c0_3] : memref<4x16x32xf32, #tpu.memory_space<vmem>>, vector<1x16x32xf32>
    %2 = vector.shape_cast %1 : vector<1x16x32xf32> to vector<16x32xf32>
    %cst = arith.constant dense<0.000000e+00> : vector<64x32xf32>
    %3 = tpu.matmul %0, %2, %cst {dimension_numbers = #tpu.dot_dimension_numbers<[1], [0], [0], [1], [0, 0, 1, 1], [], []>} : vector<64x16xf32>, vector<16x32xf32>, vector<64x32xf32> -> vector<64x32xf32>
    %c0_4 = arith.constant 0 : index
    %c0_5 = arith.constant 0 : index
    %c0_6 = arith.constant 0 : index
    %4 = vector.load %arg1[%c0_4, %c0_5, %c0_6] : memref<4x64x64xf32, #tpu.memory_space<vmem>>, vector<1x64x64xf32>
    %5 = vector.shape_cast %4 : vector<1x64x64xf32> to vector<64x64xf32>
    %cst_7 = arith.constant dense<0.000000e+00> : vector<64x32xf32>
    %6 = tpu.matmul %5, %3, %cst_7 {dimension_numbers = #tpu.dot_dimension_numbers<[1], [0], [0], [1], [0, 0, 1, 1], [], []>} : vector<64x64xf32>, vector<64x32xf32>, vector<64x32xf32> -> vector<64x32xf32>
    %c1 = arith.constant 1 : index
    %c0_8 = arith.constant 0 : index
    %c0_9 = arith.constant 0 : index
    %7 = vector.load %arg2[%c1, %c0_8, %c0_9] : memref<4x16x32xf32, #tpu.memory_space<vmem>>, vector<1x16x32xf32>
    %8 = vector.shape_cast %7 : vector<1x16x32xf32> to vector<16x32xf32>
    %cst_10 = arith.constant dense<0.000000e+00> : vector<64x32xf32>
    %9 = tpu.matmul %0, %8, %cst_10 {dimension_numbers = #tpu.dot_dimension_numbers<[1], [0], [0], [1], [0, 0, 1, 1], [], []>} : vector<64x16xf32>, vector<16x32xf32>, vector<64x32xf32> -> vector<64x32xf32>
    %c1_11 = arith.constant 1 : index
    %c0_12 = arith.constant 0 : index
    %c0_13 = arith.constant 0 : index
    %10 = vector.load %arg1[%c1_11, %c0_12, %c0_13] : memref<4x64x64xf32, #tpu.memory_space<vmem>>, vector<1x64x64xf32>
    %11 = vector.shape_cast %10 : vector<1x64x64xf32> to vector<64x64xf32>
    %cst_14 = arith.constant dense<0.000000e+00> : vector<64x32xf32>
    %12 = tpu.matmul %11, %9, %cst_14 {dimension_numbers = #tpu.dot_dimension_numbers<[1], [0], [0], [1], [0, 0, 1, 1], [], []>} : vector<64x64xf32>, vector<64x32xf32>, vector<64x32xf32> -> vector<64x32xf32>
    %13 = arith.addf %6, %12 : vector<64x32xf32>
    %c2 = arith.constant 2 : index
    %c0_15 = arith.constant 0 : index
    %c0_16 = arith.constant 0 : index
    %14 = vector.load %arg2[%c2, %c0_15, %c0_16] : memref<4x16x32xf32, #tpu.memory_space<vmem>>, vector<1x16x32xf32>
    %15 = vector.shape_cast %14 : vector<1x16x32xf32> to vector<16x32xf32>
    %cst_17 = arith.constant dense<0.000000e+00> : vector<64x32xf32>
    %16 = tpu.matmul %0, %15, %cst_17 {dimension_numbers = #tpu.dot_dimension_numbers<[1], [0], [0], [1], [0, 0, 1, 1], [], []>} : vector<64x16xf32>, vector<16x32xf32>, vector<64x32xf32> -> vector<64x32xf32>
    %c2_18 = arith.constant 2 : index
    %c0_19 = arith.constant 0 : index
    %c0_20 = arith.constant 0 : index
    %17 = vector.load %arg1[%c2_18, %c0_19, %c0_20] : memref<4x64x64xf32, #tpu.memory_space<vmem>>, vector<1x64x64xf32>
    %18 = vector.shape_cast %17 : vector<1x64x64xf32> to vector<64x64xf32>
    %cst_21 = arith.constant dense<0.000000e+00> : vector<64x32xf32>
    %19 = tpu.matmul %18, %16, %cst_21 {dimension_numbers = #tpu.dot_dimension_numbers<[1], [0], [0], [1], [0, 0, 1, 1], [], []>} : vector<64x64xf32>, vector<64x32xf32>, vector<64x32xf32> -> vector<64x32xf32>
    %20 = arith.addf %13, %19 : vector<64x32xf32>
    %c3 = arith.constant 3 : index
    %c0_22 = arith.constant 0 : index
    %c0_23 = arith.constant 0 : index
    %21 = vector.load %arg2[%c3, %c0_22, %c0_23] : memref<4x16x32xf32, #tpu.memory_space<vmem>>, vector<1x16x32xf32>
    %22 = vector.shape_cast %21 : vector<1x16x32xf32> to vector<16x32xf32>
    %cst_24 = arith.constant dense<0.000000e+00> : vector<64x32xf32>
    %23 = tpu.matmul %0, %22, %cst_24 {dimension_numbers = #tpu.dot_dimension_numbers<[1], [0], [0], [1], [0, 0, 1, 1], [], []>} : vector<64x16xf32>, vector<16x32xf32>, vector<64x32xf32> -> vector<64x32xf32>
    %c3_25 = arith.constant 3 : index
    %c0_26 = arith.constant 0 : index
    %c0_27 = arith.constant 0 : index
    %24 = vector.load %arg1[%c3_25, %c0_26, %c0_27] : memref<4x64x64xf32, #tpu.memory_space<vmem>>, vector<1x64x64xf32>
    %25 = vector.shape_cast %24 : vector<1x64x64xf32> to vector<64x64xf32>
    %cst_28 = arith.constant dense<0.000000e+00> : vector<64x32xf32>
    %26 = tpu.matmul %25, %23, %cst_28 {dimension_numbers = #tpu.dot_dimension_numbers<[1], [0], [0], [1], [0, 0, 1, 1], [], []>} : vector<64x64xf32>, vector<64x32xf32>, vector<64x32xf32> -> vector<64x32xf32>
    %27 = arith.addf %20, %26 : vector<64x32xf32>
    %c0_29 = arith.constant 0 : index
    %c0_30 = arith.constant 0 : index
    %28 = vector.load %arg3[%c0_29, %c0_30] : memref<64x64xf32, #tpu.memory_space<vmem>>, vector<64x64xf32>
    %cst_31 = arith.constant dense<0.000000e+00> : vector<64x32xf32>
    %29 = tpu.matmul %28, %27, %cst_31 {dimension_numbers = #tpu.dot_dimension_numbers<[1], [0], [0], [1], [0, 0, 1, 1], [], []>} : vector<64x64xf32>, vector<64x32xf32>, vector<64x32xf32> -> vector<64x32xf32>
    %cst_32 = arith.constant dense<0.000000e+00> : vector<64xf32>
    %30 = vector.multi_reduction <add>, %29, %cst_32 [1] : vector<64x32xf32> to vector<64xf32>
    %31 = vector.shape_cast %30 : vector<64xf32> to vector<64x1xf32>
    %32 = vector.broadcast %31 : vector<64x1xf32> to vector<64x32xf32>
    %33 = arith.subf %27, %32 : vector<64x32xf32>
    %c0_33 = arith.constant 0 : index
    %c0_34 = arith.constant 0 : index
    %34 = vector.load %arg3[%c0_33, %c0_34] : memref<64x64xf32, #tpu.memory_space<vmem>>, vector<64x64xf32>
    %35 = arith.mulf %33, %33 : vector<64x32xf32>
    %cst_35 = arith.constant dense<0.000000e+00> : vector<64x32xf32>
    %36 = tpu.matmul %34, %35, %cst_35 {dimension_numbers = #tpu.dot_dimension_numbers<[1], [0], [0], [1], [0, 0, 1, 1], [], []>} : vector<64x64xf32>, vector<64x32xf32>, vector<64x32xf32> -> vector<64x32xf32>
    %cst_36 = arith.constant dense<0.000000e+00> : vector<64xf32>
    %37 = vector.multi_reduction <add>, %36, %cst_36 [1] : vector<64x32xf32> to vector<64xf32>
    %38 = vector.shape_cast %37 : vector<64xf32> to vector<64x1xf32>
    %c0_37 = arith.constant 0 : index
    %c0_38 = arith.constant 0 : index
    %39 = vector.load %arg4[%c0_37, %c0_38] : memref<64x1xf32, #tpu.memory_space<vmem>>, vector<64x1xf32>
    %cst_39 = arith.constant 9.99999974E-6 : f32
    %40 = vector.broadcast %cst_39 : f32 to vector<64x1xf32>
    %41 = arith.addf %38, %40 : vector<64x1xf32>
    %42 = math.rsqrt %41 : vector<64x1xf32>
    %43 = arith.mulf %39, %42 : vector<64x1xf32>
    %44 = vector.broadcast %43 : vector<64x1xf32> to vector<64x32xf32>
    %45 = arith.mulf %33, %44 : vector<64x32xf32>
    %c0_40 = arith.constant 0 : index
    %c0_41 = arith.constant 0 : index
    %46 = vector.load %arg5[%c0_40, %c0_41] : memref<64x1xf32, #tpu.memory_space<vmem>>, vector<64x1xf32>
    %47 = vector.broadcast %46 : vector<64x1xf32> to vector<64x32xf32>
    %48 = arith.addf %45, %47 : vector<64x32xf32>
    %cst_42 = arith.constant 0.000000e+00 : f32
    %49 = vector.broadcast %cst_42 : f32 to vector<64x32xf32>
    %50 = arith.maximumf %48, %49 : vector<64x32xf32>
    %c0_43 = arith.constant 0 : index
    %c0_44 = arith.constant 0 : index
    %c0_45 = arith.constant 0 : index
    %51 = vector.load %arg7[%c0_43, %c0_44, %c0_45] : memref<4x32x64xf32, #tpu.memory_space<vmem>>, vector<1x32x64xf32>
    %52 = vector.shape_cast %51 : vector<1x32x64xf32> to vector<32x64xf32>
    %cst_46 = arith.constant dense<0.000000e+00> : vector<64x64xf32>
    %53 = tpu.matmul %50, %52, %cst_46 {dimension_numbers = #tpu.dot_dimension_numbers<[1], [0], [0], [1], [0, 0, 1, 1], [], []>} : vector<64x32xf32>, vector<32x64xf32>, vector<64x64xf32> -> vector<64x64xf32>
    %c0_47 = arith.constant 0 : index
    %c0_48 = arith.constant 0 : index
    %c0_49 = arith.constant 0 : index
    %54 = vector.load %arg6[%c0_47, %c0_48, %c0_49] : memref<4x96x64xf32, #tpu.memory_space<vmem>>, vector<1x96x64xf32>
    %55 = vector.shape_cast %54 : vector<1x96x64xf32> to vector<96x64xf32>
    %cst_50 = arith.constant dense<0.000000e+00> : vector<96x64xf32>
    %56 = tpu.matmul %55, %53, %cst_50 {dimension_numbers = #tpu.dot_dimension_numbers<[1], [0], [0], [1], [0, 0, 1, 1], [], []>} : vector<96x64xf32>, vector<64x64xf32>, vector<96x64xf32> -> vector<96x64xf32>
    %c1_51 = arith.constant 1 : index
    %c0_52 = arith.constant 0 : index
    %c0_53 = arith.constant 0 : index
    %57 = vector.load %arg7[%c1_51, %c0_52, %c0_53] : memref<4x32x64xf32, #tpu.memory_space<vmem>>, vector<1x32x64xf32>
    %58 = vector.shape_cast %57 : vector<1x32x64xf32> to vector<32x64xf32>
    %cst_54 = arith.constant dense<0.000000e+00> : vector<64x64xf32>
    %59 = tpu.matmul %50, %58, %cst_54 {dimension_numbers = #tpu.dot_dimension_numbers<[1], [0], [0], [1], [0, 0, 1, 1], [], []>} : vector<64x32xf32>, vector<32x64xf32>, vector<64x64xf32> -> vector<64x64xf32>
    %c1_55 = arith.constant 1 : index
    %c0_56 = arith.constant 0 : index
    %c0_57 = arith.constant 0 : index
    %60 = vector.load %arg6[%c1_55, %c0_56, %c0_57] : memref<4x96x64xf32, #tpu.memory_space<vmem>>, vector<1x96x64xf32>
    %61 = vector.shape_cast %60 : vector<1x96x64xf32> to vector<96x64xf32>
    %cst_58 = arith.constant dense<0.000000e+00> : vector<96x64xf32>
    %62 = tpu.matmul %61, %59, %cst_58 {dimension_numbers = #tpu.dot_dimension_numbers<[1], [0], [0], [1], [0, 0, 1, 1], [], []>} : vector<96x64xf32>, vector<64x64xf32>, vector<96x64xf32> -> vector<96x64xf32>
    %63 = arith.addf %56, %62 : vector<96x64xf32>
    %c2_59 = arith.constant 2 : index
    %c0_60 = arith.constant 0 : index
    %c0_61 = arith.constant 0 : index
    %64 = vector.load %arg7[%c2_59, %c0_60, %c0_61] : memref<4x32x64xf32, #tpu.memory_space<vmem>>, vector<1x32x64xf32>
    %65 = vector.shape_cast %64 : vector<1x32x64xf32> to vector<32x64xf32>
    %cst_62 = arith.constant dense<0.000000e+00> : vector<64x64xf32>
    %66 = tpu.matmul %50, %65, %cst_62 {dimension_numbers = #tpu.dot_dimension_numbers<[1], [0], [0], [1], [0, 0, 1, 1], [], []>} : vector<64x32xf32>, vector<32x64xf32>, vector<64x64xf32> -> vector<64x64xf32>
    %c2_63 = arith.constant 2 : index
    %c0_64 = arith.constant 0 : index
    %c0_65 = arith.constant 0 : index
    %67 = vector.load %arg6[%c2_63, %c0_64, %c0_65] : memref<4x96x64xf32, #tpu.memory_space<vmem>>, vector<1x96x64xf32>
    %68 = vector.shape_cast %67 : vector<1x96x64xf32> to vector<96x64xf32>
    %cst_66 = arith.constant dense<0.000000e+00> : vector<96x64xf32>
    %69 = tpu.matmul %68, %66, %cst_66 {dimension_numbers = #tpu.dot_dimension_numbers<[1], [0], [0], [1], [0, 0, 1, 1], [], []>} : vector<96x64xf32>, vector<64x64xf32>, vector<96x64xf32> -> vector<96x64xf32>
    %70 = arith.addf %63, %69 : vector<96x64xf32>
    %c3_67 = arith.constant 3 : index
    %c0_68 = arith.constant 0 : index
    %c0_69 = arith.constant 0 : index
    %71 = vector.load %arg7[%c3_67, %c0_68, %c0_69] : memref<4x32x64xf32, #tpu.memory_space<vmem>>, vector<1x32x64xf32>
    %72 = vector.shape_cast %71 : vector<1x32x64xf32> to vector<32x64xf32>
    %cst_70 = arith.constant dense<0.000000e+00> : vector<64x64xf32>
    %73 = tpu.matmul %50, %72, %cst_70 {dimension_numbers = #tpu.dot_dimension_numbers<[1], [0], [0], [1], [0, 0, 1, 1], [], []>} : vector<64x32xf32>, vector<32x64xf32>, vector<64x64xf32> -> vector<64x64xf32>
    %c3_71 = arith.constant 3 : index
    %c0_72 = arith.constant 0 : index
    %c0_73 = arith.constant 0 : index
    %74 = vector.load %arg6[%c3_71, %c0_72, %c0_73] : memref<4x96x64xf32, #tpu.memory_space<vmem>>, vector<1x96x64xf32>
    %75 = vector.shape_cast %74 : vector<1x96x64xf32> to vector<96x64xf32>
    %cst_74 = arith.constant dense<0.000000e+00> : vector<96x64xf32>
    %76 = tpu.matmul %75, %73, %cst_74 {dimension_numbers = #tpu.dot_dimension_numbers<[1], [0], [0], [1], [0, 0, 1, 1], [], []>} : vector<96x64xf32>, vector<64x64xf32>, vector<96x64xf32> -> vector<96x64xf32>
    %77 = arith.addf %70, %76 : vector<96x64xf32>
    %c0_75 = arith.constant 0 : index
    %c0_76 = arith.constant 0 : index
    %78 = vector.load %arg8[%c0_75, %c0_76] : memref<96x1xf32, #tpu.memory_space<vmem>>, vector<96x1xf32>
    %79 = vector.broadcast %78 : vector<96x1xf32> to vector<96x64xf32>
    %80 = arith.addf %77, %79 : vector<96x64xf32>
    %81 = arith.negf %80 : vector<96x64xf32>
    %82 = math.exp %81 : vector<96x64xf32>
    %cst_77 = arith.constant 1.000000e+00 : f32
    %83 = vector.broadcast %cst_77 : f32 to vector<96x64xf32>
    %84 = arith.addf %83, %82 : vector<96x64xf32>
    %85 = arith.divf %83, %84 : vector<96x64xf32>
    %c0_78 = arith.constant 0 : index
    %c0_79 = arith.constant 0 : index
    %86 = vector.load %arg9[%c0_78, %c0_79] : memref<96x64xf32, #tpu.memory_space<vmem>>, vector<96x64xf32>
    tpu.vector_store %arg9[%c0_78, %c0_79], %85 {strides = array<i32>} : memref<96x64xf32, #tpu.memory_space<vmem>>, vector<96x64xf32>,
    return
  }
}

</mosaic_0001>

<llo_original>
// kernel: forward.1
$region0: #{forward.1}
  #allocation0 [shape = 'u32[]', space=smem, size = 0x4, offset = 0x4, fixed_abs, tag = 'smem constant byte address 0x4 - core index']
  #allocation1 [shape = 'u32[144,128]{1,0:T(1,128)}', space=vmem, size = 0x12000, scoped, tag = 'internal scratch']
  %s0 = inlined_call_operand.vmem [shape: f32[64,16], index: 0, kind: input, shape index: {}]
  %s1 = inlined_call_operand.vmem [shape: f32[4,64,64], index: 1, kind: input, shape index: {}]
  %s2 = inlined_call_operand.vmem [shape: f32[4,16,32], index: 2, kind: input, shape index: {}]
  %s3 = inlined_call_operand.vmem [shape: f32[64,64], index: 3, kind: input, shape index: {}]
  %s4 = inlined_call_operand.vmem [shape: f32[64,1], index: 4, kind: input, shape index: {}]
  %s5 = inlined_call_operand.vmem [shape: f32[64,1], index: 5, kind: input, shape index: {}]
  %s6 = inlined_call_operand.vmem [shape: f32[4,96,64], index: 6, kind: input, shape index: {}]
  %s7 = inlined_call_operand.vmem [shape: f32[4,32,64], index: 7, kind: input, shape index: {}]
  %s8 = inlined_call_operand.vmem [shape: f32[96,1], index: 8, kind: input, shape index: {}]
  %s9 = inlined_call_operand.vmem [shape: f32[96,64], index: 9, kind: output, shape index: {}]
  %s10 = sld [smem:[#allocation0]]
  $region46: #{forward.1} parent=0
    _
  %s12 = ssub.s32 1, %s10
  %s13 = scalar_select 0, %s12, %s10
  // Predicated region
  $region2: #{forward.1} parent=0 // pred_check
    _
  $region3: #{forward.1} parent=0 // pred_check_branch
    %15 = sbr.rel (0) target = $region5
  $region4: #{forward.1} parent=0 // pred_region
    _
  $region5: #{forward.1} parent=0 // pred_fallthru
    _
  // Predicated region
  $region6: #{forward.1} parent=0 // pred_check
    _
  $region7: #{forward.1} parent=0 // pred_check_branch
    %17 = sbr.rel (0) target = $region9
  $region8: #{forward.1} parent=0 // pred_region
    _
  $region9: #{forward.1} parent=0 // pred_fallthru
    _
  // Predicated region
  $region10: #{forward.1} parent=0 // pred_check
    _
  $region11: #{forward.1} parent=0 // pred_check_branch
    %19 = sbr.rel (0) target = $region13
  $region12: #{forward.1} parent=0 // pred_region
    _
  $region13: #{forward.1} parent=0 // pred_fallthru
    _
  // Predicated region
  $region14: #{forward.1} parent=0 // pred_check
    _
  $region15: #{forward.1} parent=0 // pred_check_branch
    %21 = sbr.rel (0) target = $region17
  $region16: #{forward.1} parent=0 // pred_region
    _
  $region17: #{forward.1} parent=0 // pred_fallthru
    _
  // Predicated region
  $region18: #{forward.1} parent=0 // pred_check
    _
  $region19: #{forward.1} parent=0 // pred_check_branch
    %23 = sbr.rel (0) target = $region21
  $region20: #{forward.1} parent=0 // pred_region
    _
  $region21: #{forward.1} parent=0 // pred_fallthru
    _
  // Predicated region
  $region22: #{forward.1} parent=0 // pred_check
    _
  $region23: #{forward.1} parent=0 // pred_check_branch
    %25 = sbr.rel (0) target = $region25
  $region24: #{forward.1} parent=0 // pred_region
    _
  $region25: #{forward.1} parent=0 // pred_fallthru
    _
  // Predicated region
  $region26: #{forward.1} parent=0 // pred_check
    _
  $region27: #{forward.1} parent=0 // pred_check_branch
    %27 = sbr.rel (0) target = $region29
  $region28: #{forward.1} parent=0 // pred_region
    _
  $region29: #{forward.1} parent=0 // pred_fallthru
    _
  // Predicated region
  $region30: #{forward.1} parent=0 // pred_check
    _
  $region31: #{forward.1} parent=0 // pred_check_branch
    %29 = sbr.rel (0) target = $region33
  $region32: #{forward.1} parent=0 // pred_region
    _
  $region33: #{forward.1} parent=0 // pred_fallthru
    _
  // Predicated region
  $region34: #{forward.1} parent=0 // pred_check
    _
  $region35: #{forward.1} parent=0 // pred_check_branch
    %31 = sbr.rel (0) target = $region37
  $region36: #{forward.1} parent=0 // pred_region
    _
  $region37: #{forward.1} parent=0 // pred_fallthru
    _
  %v32 = vld [vmem:[%s0] sm:$0xff]
  %v33 = vld [vmem:[%s0 + $0x8] sm:$0xff]
  %v34 = vld [vmem:[%s0 + $0x10] sm:$0xff]
  %v35 = vld [vmem:[%s0 + $0x18] sm:$0xff]
  %v36 = vld [vmem:[%s0 + $0x20] sm:$0xff]
  %v37 = vld [vmem:[%s0 + $0x28] sm:$0xff]
  %v38 = vld [vmem:[%s0 + $0x30] sm:$0xff]
  %v39 = vld [vmem:[%s0 + $0x38] sm:$0xff]
  %v40 = vld [vmem:[%s2] sm:$0xff]
  %v41 = vld [vmem:[%s2 + $0x8] sm:$0xff]
  %vm42 = vcmask 130048
  %v44 = vsel %vm42, %v32, 0
  %v47 = vsel %vm42, %v33, 0
  %v50 = vsel %vm42, %v34, 0
  %v53 = vsel %vm42, %v35, 0
  %v56 = vsel %vm42, %v36, 0
  %v59 = vsel %vm42, %v37, 0
  %v62 = vsel %vm42, %v38, 0
  %v65 = vsel %vm42, %v39, 0
  %67 = vmatprep.subr.mxu0 0.0
  %68 = vmatpush1.msra.mxu0 %v40
  %69 = vmatprep.subr.mxu0 0.0
  %70 = vmatpush1.msra.mxu0 %v41
  %71 = vmatprep.subr.mxu0 0.0
  %72 = vmatpush1.msra.mxu0 0.0
  %73 = vmatprep.subr.mxu0 0.0
  %74 = vmatpush1.msra.mxu0 0.0
  %75 = vmatprep.subr.mxu0 0.0
  %76 = vmatpush1.msra.mxu0 0.0
  %77 = vmatprep.subr.mxu0 0.0
  %78 = vmatpush1.msra.mxu0 0.0
  %79 = vmatprep.subr.mxu0 0.0
  %80 = vmatpush1.msra.mxu0 0.0
  %81 = vmatprep.subr.mxu0 0.0
  %82 = vmatpush1.msra.mxu0 0.0
  %83 = vmatprep.subr.mxu0 0.0
  %84 = vmatpush1.msra.mxu0 0.0
  %85 = vmatprep.subr.mxu0 0.0
  %86 = vmatpush1.msra.mxu0 0.0
  %87 = vmatprep.subr.mxu0 0.0
  %88 = vmatpush1.msra.mxu0 0.0
  %89 = vmatprep.subr.mxu0 0.0
  %90 = vmatpush1.msra.mxu0 0.0
  %91 = vmatprep.subr.mxu0 0.0
  %92 = vmatpush1.msra.mxu0 0.0
  %93 = vmatprep.subr.mxu0 0.0
  %94 = vmatpush1.msra.mxu0 0.0
  %95 = vmatprep.subr.mxu0 0.0
  %96 = vmatpush1.msra.mxu0 0.0
  %97 = vmatprep.subr.mxu0 0.0
  %98 = vmatpush1.msra.mxu0 0.0
  %99 = vmatprep.subr.mxu0 0.0
  %100 = vmatpush1.msra.mxu0 0.0
  %101 = vmatprep.subr.mxu0 0.0
  %102 = vmatpush1.msra.mxu0 0.0
  %103 = vmatprep.subr.mxu0 0.0
  %104 = vmatpush1.msra.mxu0 0.0
  %105 = vmatprep.subr.mxu0 0.0
  %106 = vmatpush1.msra.mxu0 0.0
  %107 = vmatprep.subr.mxu0 0.0
  %108 = vmatpush1.msra.mxu0 0.0
  %109 = vmatprep.subr.mxu0 0.0
  %110 = vmatpush1.msra.mxu0 0.0
  %111 = vmatprep.subr.mxu0 0.0
  %112 = vmatpush1.msra.mxu0 0.0
  %113 = vmatprep.subr.mxu0 0.0
  %114 = vmatpush1.msra.mxu0 0.0
  %115 = vmatprep.subr.mxu0 0.0
  %116 = vmatpush1.msra.mxu0 0.0
  %117 = vmatprep.subr.mxu0 0.0
  %118 = vmatpush1.msra.mxu0 0.0
  %119 = vmatprep.subr.mxu0 0.0
  %120 = vmatpush1.msra.mxu0 0.0
  %121 = vmatprep.subr.mxu0 0.0
  %122 = vmatpush1.msra.mxu0 0.0
  %123 = vmatprep.subr.mxu0 0.0
  %124 = vmatpush1.msra.mxu0 0.0
  %125 = vmatprep.subr.mxu0 0.0
  %126 = vmatpush1.msra.mxu0 0.0
  %127 = vmatprep.subr.mxu0 0.0
  %128 = vmatpush1.msra.mxu0 0.0
  %129 = vmatprep.subr.mxu0 0.0
  %130 = vmatpush1.msra.mxu0 0.0
  %131 = vmatprep.mubr.f32.mxu0 0.0
  %132 = vmatmul.mubr.f32.gmra.mrb[0].mxu0 %v44
  %v133 = vpop.f32.mrb[0].mxu0
  %v134 = vadd.f32 0.0, %v133
  %v135 = vpop.f32.mrb[0].mxu0
  %136 = vmatprep.mubr.f32.mxu0 0.0
  %137 = vmatmul.mubr.f32.gmra.mrb[0].mxu0 %v47
  %v138 = vpop.f32.mrb[0].mxu0
  %v139 = vadd.f32 0.0, %v138
  %v140 = vpop.f32.mrb[0].mxu0
  %141 = vmatprep.mubr.f32.mxu0 0.0
  %142 = vmatmul.mubr.f32.gmra.mrb[0].mxu0 %v50
  %v143 = vpop.f32.mrb[0].mxu0
  %v144 = vadd.f32 0.0, %v143
  %v145 = vpop.f32.mrb[0].mxu0
  %146 = vmatprep.mubr.f32.mxu0 0.0
  %147 = vmatmul.mubr.f32.gmra.mrb[0].mxu0 %v53
  %v148 = vpop.f32.mrb[0].mxu0
  %v149 = vadd.f32 0.0, %v148
  %v150 = vpop.f32.mrb[0].mxu0
  %151 = vmatprep.mubr.f32.mxu0 0.0
  %152 = vmatmul.mubr.f32.gmra.mrb[0].mxu0 %v56
  %v153 = vpop.f32.mrb[0].mxu0
  %v154 = vadd.f32 0.0, %v153
  %v155 = vpop.f32.mrb[0].mxu0
  %156 = vmatprep.mubr.f32.mxu0 0.0
  %157 = vmatmul.mubr.f32.gmra.mrb[0].mxu0 %v59
  %v158 = vpop.f32.mrb[0].mxu0
  %v159 = vadd.f32 0.0, %v158
  %v160 = vpop.f32.mrb[0].mxu0
  %161 = vmatprep.mubr.f32.mxu0 0.0
  %162 = vmatmul.mubr.f32.gmra.mrb[0].mxu0 %v62
  %v163 = vpop.f32.mrb[0].mxu0
  %v164 = vadd.f32 0.0, %v163
  %v165 = vpop.f32.mrb[0].mxu0
  %166 = vmatprep.mubr.f32.mxu0 0.0
  %167 = vmatmul.mubr.f32.gmra.mrb[0].mxu0 %v65
  %v168 = vpop.f32.mrb[0].mxu0
  %v169 = vadd.f32 0.0, %v168
  %v170 = vpop.f32.mrb[0].mxu0
  %171 = vdwg.mxu0
  %v172 = vld [vmem:[%s1] sm:$0xff]
  %v173 = vld [vmem:[%s1 + $0x8] sm:$0xff]
  %v174 = vld [vmem:[%s1 + $0x10] sm:$0xff]
  %v175 = vld [vmem:[%s1 + $0x18] sm:$0xff]
  %v176 = vld [vmem:[%s1 + $0x20] sm:$0xff]
  %v177 = vld [vmem:[%s1 + $0x28] sm:$0xff]
  %v178 = vld [vmem:[%s1 + $0x30] sm:$0xff]
  %v179 = vld [vmem:[%s1 + $0x38] sm:$0xff]
  %s180 = scalar_lea.vmem %s2, 16
  %v181 = vld [vmem:[%s180] sm:$0xff]
  %v182 = vld [vmem:[%s180 + $0x8] sm:$0xff]
  %183 = vmatprep.subr.mxu0 0.0
  %184 = vmatpush1.msra.mxu0 %v181
  %185 = vmatprep.subr.mxu0 0.0
  %186 = vmatpush1.msra.mxu0 %v182
  %187 = vmatprep.subr.mxu0 0.0
  %188 = vmatpush1.msra.mxu0 0.0
  %189 = vmatprep.subr.mxu0 0.0
  %190 = vmatpush1.msra.mxu0 0.0
  %191 = vmatprep.subr.mxu0 0.0
  %192 = vmatpush1.msra.mxu0 0.0
  %193 = vmatprep.subr.mxu0 0.0
  %194 = vmatpush1.msra.mxu0 0.0
  %195 = vmatprep.subr.mxu0 0.0
  %196 = vmatpush1.msra.mxu0 0.0
  %197 = vmatprep.subr.mxu0 0.0
  %198 = vmatpush1.msra.mxu0 0.0
  %199 = vmatprep.subr.mxu0 0.0
  %200 = vmatpush1.msra.mxu0 0.0
  %201 = vmatprep.subr.mxu0 0.0
  %202 = vmatpush1.msra.mxu0 0.0
  %203 = vmatprep.subr.mxu0 0.0
  %204 = vmatpush1.msra.mxu0 0.0
  %205 = vmatprep.subr.mxu0 0.0
  %206 = vmatpush1.msra.mxu0 0.0
  %207 = vmatprep.subr.mxu0 0.0
  %208 = vmatpush1.msra.mxu0 0.0
  %209 = vmatprep.subr.mxu0 0.0
  %210 = vmatpush1.msra.mxu0 0.0
  %211 = vmatprep.subr.mxu0 0.0
  %212 = vmatpush1.msra.mxu0 0.0
  %213 = vmatprep.subr.mxu0 0.0
  %214 = vmatpush1.msra.mxu0 0.0
  %215 = vmatprep.subr.mxu0 0.0
  %216 = vmatpush1.msra.mxu0 0.0
  %217 = vmatprep.subr.mxu0 0.0
  %218 = vmatpush1.msra.mxu0 0.0
  %219 = vmatprep.subr.mxu0 0.0
  %220 = vmatpush1.msra.mxu0 0.0
  %221 = vmatprep.subr.mxu0 0.0
  %222 = vmatpush1.msra.mxu0 0.0
  %223 = vmatprep.subr.mxu0 0.0
  %224 = vmatpush1.msra.mxu0 0.0
  %225 = vmatprep.subr.mxu0 0.0
  %226 = vmatpush1.msra.mxu0 0.0
  %227 = vmatprep.subr.mxu0 0.0
  %228 = vmatpush1.msra.mxu0 0.0
  %229 = vmatprep.subr.mxu0 0.0
  %230 = vmatpush1.msra.mxu0 0.0
  %231 = vmatprep.subr.mxu0 0.0
  %232 = vmatpush1.msra.mxu0 0.0
  %233 = vmatprep.subr.mxu0 0.0
  %234 = vmatpush1.msra.mxu0 0.0
  %235 = vmatprep.subr.mxu0 0.0
  %236 = vmatpush1.msra.mxu0 0.0
  %237 = vmatprep.subr.mxu0 0.0
  %238 = vmatpush1.msra.mxu0 0.0
  %239 = vmatprep.subr.mxu0 0.0
  %240 = vmatpush1.msra.mxu0 0.0
  %241 = vmatprep.subr.mxu0 0.0
  %242 = vmatpush1.msra.mxu0 0.0
  %243 = vmatprep.subr.mxu0 0.0
  %244 = vmatpush1.msra.mxu0 0.0
  %245 = vmatprep.subr.mxu0 0.0
  %246 = vmatpush1.msra.mxu0 0.0
  %247 = vmatprep.mubr.f32.mxu0 0.0
  %248 = vmatmul.mubr.f32.gmra.mrb[0].mxu0 %v44
  %v249 = vpop.f32.mrb[0].mxu0
  %v250 = vadd.f32 0.0, %v249
  %v251 = vpop.f32.mrb[0].mxu0
  %252 = vmatprep.mubr.f32.mxu0 0.0
  %253 = vmatmul.mubr.f32.gmra.mrb[0].mxu0 %v47
  %v254 = vpop.f32.mrb[0].mxu0
  %v255 = vadd.f32 0.0, %v254
  %v256 = vpop.f32.mrb[0].mxu0
  %257 = vmatprep.mubr.f32.mxu0 0.0
  %258 = vmatmul.mubr.f32.gmra.mrb[0].mxu0 %v50
  %v259 = vpop.f32.mrb[0].mxu0
  %v260 = vadd.f32 0.0, %v259
  %v261 = vpop.f32.mrb[0].mxu0
  %262 = vmatprep.mubr.f32.mxu0 0.0
  %263 = vmatmul.mubr.f32.gmra.mrb[0].mxu0 %v53
  %v264 = vpop.f32.mrb[0].mxu0
  %v265 = vadd.f32 0.0, %v264
  %v266 = vpop.f32.mrb[0].mxu0
  %267 = vmatprep.mubr.f32.mxu0 0.0
  %268 = vmatmul.mubr.f32.gmra.mrb[0].mxu0 %v56
  %v269 = vpop.f32.mrb[0].mxu0
  %v270 = vadd.f32 0.0, %v269
  %v271 = vpop.f32.mrb[0].mxu0
  %272 = vmatprep.mubr.f32.mxu0 0.0
  %273 = vmatmul.mubr.f32.gmra.mrb[0].mxu0 %v59
  %v274 = vpop.f32.mrb[0].mxu0
  %v275 = vadd.f32 0.0, %v274
  %v276 = vpop.f32.mrb[0].mxu0
  %277 = vmatprep.mubr.f32.mxu0 0.0
  %278 = vmatmul.mubr.f32.gmra.mrb[0].mxu0 %v62
  %v279 = vpop.f32.mrb[0].mxu0
  %v280 = vadd.f32 0.0, %v279
  %v281 = vpop.f32.mrb[0].mxu0
  %282 = vmatprep.mubr.f32.mxu0 0.0
  %283 = vmatmul.mubr.f32.gmra.mrb[0].mxu0 %v65
  %v284 = vpop.f32.mrb[0].mxu0
  %v285 = vadd.f32 0.0, %v284
  %v286 = vpop.f32.mrb[0].mxu0
  %287 = vdwg.mxu0
  %s288 = scalar_lea.vmem %s1, 64
  %v289 = vld [vmem:[%s288] sm:$0xff]
  %v290 = vld [vmem:[%s288 + $0x8] sm:$0xff]
  %v291 = vld [vmem:[%s288 + $0x10] sm:$0xff]
  %v292 = vld [vmem:[%s288 + $0x18] sm:$0xff]
  %v293 = vld [vmem:[%s288 + $0x20] sm:$0xff]
  %v294 = vld [vmem:[%s288 + $0x28] sm:$0xff]
  %v295 = vld [vmem:[%s288 + $0x30] sm:$0xff]
  %v296 = vld [vmem:[%s288 + $0x38] sm:$0xff]
  %vm297 = vcmask 523264
  %v299 = vsel %vm297, %v289, 0
  %v302 = vsel %vm297, %v290, 0
  %v305 = vsel %vm297, %v291, 0
  %v308 = vsel %vm297, %v292, 0
  %v311 = vsel %vm297, %v293, 0
  %v314 = vsel %vm297, %v294, 0
  %v317 = vsel %vm297, %v295, 0
  %v320 = vsel %vm297, %v296, 0
  %322 = vmatprep.subr.mxu0 0.0
  %323 = vmatpush1.msra.mxu0 %v250
  %324 = vmatprep.subr.mxu0 0.0
  %325 = vmatpush1.msra.mxu0 %v255
  %326 = vmatprep.subr.mxu0 0.0
  %327 = vmatpush1.msra.mxu0 %v260
  %328 = vmatprep.subr.mxu0 0.0
  %329 = vmatpush1.msra.mxu0 %v265
  %330 = vmatprep.subr.mxu0 0.0
  %331 = vmatpush1.msra.mxu0 %v270
  %332 = vmatprep.subr.mxu0 0.0
  %333 = vmatpush1.msra.mxu0 %v275
  %334 = vmatprep.subr.mxu0 0.0
  %335 = vmatpush1.msra.mxu0 %v280
  %336 = vmatprep.subr.mxu0 0.0
  %337 = vmatpush1.msra.mxu0 %v285
  %338 = vmatprep.subr.mxu0 0.0
  %339 = vmatpush1.msra.mxu0 0.0
  %340 = vmatprep.subr.mxu0 0.0
  %341 = vmatpush1.msra.mxu0 0.0
  %342 = vmatprep.subr.mxu0 0.0
  %343 = vmatpush1.msra.mxu0 0.0
  %344 = vmatprep.subr.mxu0 0.0
  %345 = vmatpush1.msra.mxu0 0.0
  %346 = vmatprep.subr.mxu0 0.0
  %347 = vmatpush1.msra.mxu0 0.0
  %348 = vmatprep.subr.mxu0 0.0
  %349 = vmatpush1.msra.mxu0 0.0
  %350 = vmatprep.subr.mxu0 0.0
  %351 = vmatpush1.msra.mxu0 0.0
  %352 = vmatprep.subr.mxu0 0.0
  %353 = vmatpush1.msra.mxu0 0.0
  %354 = vmatprep.subr.mxu0 0.0
  %355 = vmatpush1.msra.mxu0 0.0
  %356 = vmatprep.subr.mxu0 0.0
  %357 = vmatpush1.msra.mxu0 0.0
  %358 = vmatprep.subr.mxu0 0.0
  %359 = vmatpush1.msra.mxu0 0.0
  %360 = vmatprep.subr.mxu0 0.0
  %361 = vmatpush1.msra.mxu0 0.0
  %362 = vmatprep.subr.mxu0 0.0
  %363 = vmatpush1.msra.mxu0 0.0
  %364 = vmatprep.subr.mxu0 0.0
  %365 = vmatpush1.msra.mxu0 0.0
  %366 = vmatprep.subr.mxu0 0.0
  %367 = vmatpush1.msra.mxu0 0.0
  %368 = vmatprep.subr.mxu0 0.0
  %369 = vmatpush1.msra.mxu0 0.0
  %370 = vmatprep.subr.mxu0 0.0
  %371 = vmatpush1.msra.mxu0 0.0
  %372 = vmatprep.subr.mxu0 0.0
  %373 = vmatpush1.msra.mxu0 0.0
  %374 = vmatprep.subr.mxu0 0.0
  %375 = vmatpush1.msra.mxu0 0.0
  %376 = vmatprep.subr.mxu0 0.0
  %377 = vmatpush1.msra.mxu0 0.0
  %378 = vmatprep.subr.mxu0 0.0
  %379 = vmatpush1.msra.mxu0 0.0
  %380 = vmatprep.subr.mxu0 0.0
  %381 = vmatpush1.msra.mxu0 0.0
  %382 = vmatprep.subr.mxu0 0.0
  %383 = vmatpush1.msra.mxu0 0.0
  %384 = vmatprep.subr.mxu0 0.0
  %385 = vmatpush1.msra.mxu0 0.0
  %386 = vmatprep.mubr.f32.mxu0 0.0
  %387 = vmatmul.mubr.f32.gmra.mrb[0].mxu0 %v299
  %v388 = vpop.f32.mrb[0].mxu0
  %v389 = vadd.f32 0.0, %v388
  %v390 = vpop.f32.mrb[0].mxu0
  %391 = vmatprep.mubr.f32.mxu0 0.0
  %392 = vmatmul.mubr.f32.gmra.mrb[0].mxu0 %v302
  %v393 = vpop.f32.mrb[0].mxu0
  %v394 = vadd.f32 0.0, %v393
  %v395 = vpop.f32.mrb[0].mxu0
  %396 = vmatprep.mubr.f32.mxu0 0.0
  %397 = vmatmul.mubr.f32.gmra.mrb[0].mxu0 %v305
  %v398 = vpop.f32.mrb[0].mxu0
  %v399 = vadd.f32 0.0, %v398
  %v400 = vpop.f32.mrb[0].mxu0
  %401 = vmatprep.mubr.f32.mxu0 0.0
  %402 = vmatmul.mubr.f32.gmra.mrb[0].mxu0 %v308
  %v403 = vpop.f32.mrb[0].mxu0
  %v404 = vadd.f32 0.0, %v403
  %v405 = vpop.f32.mrb[0].mxu0
  %406 = vmatprep.mubr.f32.mxu0 0.0
  %407 = vmatmul.mubr.f32.gmra.mrb[0].mxu0 %v311
  %v408 = vpop.f32.mrb[0].mxu0
  %v409 = vadd.f32 0.0, %v408
  %v410 = vpop.f32.mrb[0].mxu0
  %411 = vmatprep.mubr.f32.mxu0 0.0
  %412 = vmatmul.mubr.f32.gmra.mrb[0].mxu0 %v314
  %v413 = vpop.f32.mrb[0].mxu0
  %v414 = vadd.f32 0.0, %v413
  %v415 = vpop.f32.mrb[0].mxu0
  %416 = vmatprep.mubr.f32.mxu0 0.0
  %417 = vmatmul.mubr.f32.gmra.mrb[0].mxu0 %v317
  %v418 = vpop.f32.mrb[0].mxu0
  %v419 = vadd.f32 0.0, %v418
  %v420 = vpop.f32.mrb[0].mxu0
  %421 = vmatprep.mubr.f32.mxu0 0.0
  %422 = vmatmul.mubr.f32.gmra.mrb[0].mxu0 %v320
  %v423 = vpop.f32.mrb[0].mxu0
  %v424 = vadd.f32 0.0, %v423
  %v425 = vpop.f32.mrb[0].mxu0
  %426 = vdwg.mxu0
  %v428 = vsel %vm297, %v172, 0
  %v431 = vsel %vm297, %v173, 0
  %v434 = vsel %vm297, %v174, 0
  %v437 = vsel %vm297, %v175, 0
  %v440 = vsel %vm297, %v176, 0
  %v443 = vsel %vm297, %v177, 0
  %v446 = vsel %vm297, %v178, 0
  %v449 = vsel %vm297, %v179, 0
  %451 = vmatprep.subr.mxu0 0.0
  %452 = vmatpush1.msra.mxu0 %v134
  %453 = vmatprep.subr.mxu0 0.0
  %454 = vmatpush1.msra.mxu0 %v139
  %455 = vmatprep.subr.mxu0 0.0
  %456 = vmatpush1.msra.mxu0 %v144
  %457 = vmatprep.subr.mxu0 0.0
  %458 = vmatpush1.msra.mxu0 %v149
  %459 = vmatprep.subr.mxu0 0.0
  %460 = vmatpush1.msra.mxu0 %v154
  %461 = vmatprep.subr.mxu0 0.0
  %462 = vmatpush1.msra.mxu0 %v159
  %463 = vmatprep.subr.mxu0 0.0
  %464 = vmatpush1.msra.mxu0 %v164
  %465 = vmatprep.subr.mxu0 0.0
  %466 = vmatpush1.msra.mxu0 %v169
  %467 = vmatprep.subr.mxu0 0.0
  %468 = vmatpush1.msra.mxu0 0.0
  %469 = vmatprep.subr.mxu0 0.0
  %470 = vmatpush1.msra.mxu0 0.0
  %471 = vmatprep.subr.mxu0 0.0
  %472 = vmatpush1.msra.mxu0 0.0
  %473 = vmatprep.subr.mxu0 0.0
  %474 = vmatpush1.msra.mxu0 0.0
  %475 = vmatprep.subr.mxu0 0.0
  %476 = vmatpush1.msra.mxu0 0.0
  %477 = vmatprep.subr.mxu0 0.0
  %478 = vmatpush1.msra.mxu0 0.0
  %479 = vmatprep.subr.mxu0 0.0
  %480 = vmatpush1.msra.mxu0 0.0
  %481 = vmatprep.subr.mxu0 0.0
  %482 = vmatpush1.msra.mxu0 0.0
  %483 = vmatprep.subr.mxu0 0.0
  %484 = vmatpush1.msra.mxu0 0.0
  %485 = vmatprep.subr.mxu0 0.0
  %486 = vmatpush1.msra.mxu0 0.0
  %487 = vmatprep.subr.mxu0 0.0
  %488 = vmatpush1.msra.mxu0 0.0
  %489 = vmatprep.subr.mxu0 0.0
  %490 = vmatpush1.msra.mxu0 0.0
  %491 = vmatprep.subr.mxu0 0.0
  %492 = vmatpush1.msra.mxu0 0.0
  %493 = vmatprep.subr.mxu0 0.0
  %494 = vmatpush1.msra.mxu0 0.0
  %495 = vmatprep.subr.mxu0 0.0
  %496 = vmatpush1.msra.mxu0 0.0
  %497 = vmatprep.subr.mxu0 0.0
  %498 = vmatpush1.msra.mxu0 0.0
  %499 = vmatprep.subr.mxu0 0.0
  %500 = vmatpush1.msra.mxu0 0.0
  %501 = vmatprep.subr.mxu0 0.0
  %502 = vmatpush1.msra.mxu0 0.0
  %503 = vmatprep.subr.mxu0 0.0
  %504 = vmatpush1.msra.mxu0 0.0
  %505 = vmatprep.subr.mxu0 0.0
  %506 = vmatpush1.msra.mxu0 0.0
  %507 = vmatprep.subr.mxu0 0.0
  %508 = vmatpush1.msra.mxu0 0.0
  %509 = vmatprep.subr.mxu0 0.0
  %510 = vmatpush1.msra.mxu0 0.0
  %511 = vmatprep.subr.mxu0 0.0
  %512 = vmatpush1.msra.mxu0 0.0
  %513 = vmatprep.subr.mxu0 0.0
  %514 = vmatpush1.msra.mxu0 0.0
  %515 = vmatprep.mubr.f32.mxu0 0.0
  %516 = vmatmul.mubr.f32.gmra.mrb[0].mxu0 %v428
  %v517 = vpop.f32.mrb[0].mxu0
  %v518 = vadd.f32 %v389, %v517
  %v519 = vpop.f32.mrb[0].mxu0
  %520 = vmatprep.mubr.f32.mxu0 0.0
  %521 = vmatmul.mubr.f32.gmra.mrb[0].mxu0 %v431
  %v522 = vpop.f32.mrb[0].mxu0
  %v523 = vadd.f32 %v394, %v522
  %v524 = vpop.f32.mrb[0].mxu0
  %525 = vmatprep.mubr.f32.mxu0 0.0
  %526 = vmatmul.mubr.f32.gmra.mrb[0].mxu0 %v434
  %v527 = vpop.f32.mrb[0].mxu0
  %v528 = vadd.f32 %v399, %v527
  %v529 = vpop.f32.mrb[0].mxu0
  %530 = vmatprep.mubr.f32.mxu0 0.0
  %531 = vmatmul.mubr.f32.gmra.mrb[0].mxu0 %v437
  %v532 = vpop.f32.mrb[0].mxu0
  %v533 = vadd.f32 %v404, %v532
  %v534 = vpop.f32.mrb[0].mxu0
  %535 = vmatprep.mubr.f32.mxu0 0.0
  %536 = vmatmul.mubr.f32.gmra.mrb[0].mxu0 %v440
  %v537 = vpop.f32.mrb[0].mxu0
  %v538 = vadd.f32 %v409, %v537
  %v539 = vpop.f32.mrb[0].mxu0
  %540 = vmatprep.mubr.f32.mxu0 0.0
  %541 = vmatmul.mubr.f32.gmra.mrb[0].mxu0 %v443
  %v542 = vpop.f32.mrb[0].mxu0
  %v543 = vadd.f32 %v414, %v542
  %v544 = vpop.f32.mrb[0].mxu0
  %545 = vmatprep.mubr.f32.mxu0 0.0
  %546 = vmatmul.mubr.f32.gmra.mrb[0].mxu0 %v446
  %v547 = vpop.f32.mrb[0].mxu0
  %v548 = vadd.f32 %v419, %v547
  %v549 = vpop.f32.mrb[0].mxu0
  %550 = vmatprep.mubr.f32.mxu0 0.0
  %551 = vmatmul.mubr.f32.gmra.mrb[0].mxu0 %v449
  %v552 = vpop.f32.mrb[0].mxu0
  %v553 = vadd.f32 %v424, %v552
  %v554 = vpop.f32.mrb[0].mxu0
  %555 = vdwg.mxu0
  %s556 = scalar_lea.vmem %s2, 32
  %v557 = vld [vmem:[%s556] sm:$0xff]
  %v558 = vld [vmem:[%s556 + $0x8] sm:$0xff]
  %559 = vmatprep.subr.mxu0 0.0
  %560 = vmatpush1.msra.mxu0 %v557
  %561 = vmatprep.subr.mxu0 0.0
  %562 = vmatpush1.msra.mxu0 %v558
  %563 = vmatprep.subr.mxu0 0.0
  %564 = vmatpush1.msra.mxu0 0.0
  %565 = vmatprep.subr.mxu0 0.0
  %566 = vmatpush1.msra.mxu0 0.0
  %567 = vmatprep.subr.mxu0 0.0
  %568 = vmatpush1.msra.mxu0 0.0
  %569 = vmatprep.subr.mxu0 0.0
  %570 = vmatpush1.msra.mxu0 0.0
  %571 = vmatprep.subr.mxu0 0.0
  %572 = vmatpush1.msra.mxu0 0.0
  %573 = vmatprep.subr.mxu0 0.0
  %574 = vmatpush1.msra.mxu0 0.0
  %575 = vmatprep.subr.mxu0 0.0
  %576 = vmatpush1.msra.mxu0 0.0
  %577 = vmatprep.subr.mxu0 0.0
  %578 = vmatpush1.msra.mxu0 0.0
  %579 = vmatprep.subr.mxu0 0.0
  %580 = vmatpush1.msra.mxu0 0.0
  %581 = vmatprep.subr.mxu0 0.0
  %582 = vmatpush1.msra.mxu0 0.0
  %583 = vmatprep.subr.mxu0 0.0
  %584 = vmatpush1.msra.mxu0 0.0
  %585 = vmatprep.subr.mxu0 0.0
  %586 = vmatpush1.msra.mxu0 0.0
  %587 = vmatprep.subr.mxu0 0.0
  %588 = vmatpush1.msra.mxu0 0.0
  %589 = vmatprep.subr.mxu0 0.0
  %590 = vmatpush1.msra.mxu0 0.0
  %591 = vmatprep.subr.mxu0 0.0
  %592 = vmatpush1.msra.mxu0 0.0
  %593 = vmatprep.subr.mxu0 0.0
  %594 = vmatpush1.msra.mxu0 0.0
  %595 = vmatprep.subr.mxu0 0.0
  %596 = vmatpush1.msra.mxu0 0.0
  %597 = vmatprep.subr.mxu0 0.0
  %598 = vmatpush1.msra.mxu0 0.0
  %599 = vmatprep.subr.mxu0 0.0
  %600 = vmatpush1.msra.mxu0 0.0
  %601 = vmatprep.subr.mxu0 0.0
  %602 = vmatpush1.msra.mxu0 0.0
  %603 = vmatprep.subr.mxu0 0.0
  %604 = vmatpush1.msra.mxu0 0.0
  %605 = vmatprep.subr.mxu0 0.0
  %606 = vmatpush1.msra.mxu0 0.0
  %607 = vmatprep.subr.mxu0 0.0
  %608 = vmatpush1.msra.mxu0 0.0
  %609 = vmatprep.subr.mxu0 0.0
  %610 = vmatpush1.msra.mxu0 0.0
  %611 = vmatprep.subr.mxu0 0.0
  %612 = vmatpush1.msra.mxu0 0.0
  %613 = vmatprep.subr.mxu0 0.0
  %614 = vmatpush1.msra.mxu0 0.0
  %615 = vmatprep.subr.mxu0 0.0
  %616 = vmatpush1.msra.mxu0 0.0
  %617 = vmatprep.subr.mxu0 0.0
  %618 = vmatpush1.msra.mxu0 0.0
  %619 = vmatprep.subr.mxu0 0.0
  %620 = vmatpush1.msra.mxu0 0.0
  %621 = vmatprep.subr.mxu0 0.0
  %622 = vmatpush1.msra.mxu0 0.0
  %623 = vmatprep.mubr.f32.mxu0 0.0
  %624 = vmatmul.mubr.f32.gmra.mrb[0].mxu0 %v44
  %v625 = vpop.f32.mrb[0].mxu0
  %v626 = vadd.f32 0.0, %v625
  %v627 = vpop.f32.mrb[0].mxu0
  %628 = vmatprep.mubr.f32.mxu0 0.0
  %629 = vmatmul.mubr.f32.gmra.mrb[0].mxu0 %v47
  %v630 = vpop.f32.mrb[0].mxu0
  %v631 = vadd.f32 0.0, %v630
  %v632 = vpop.f32.mrb[0].mxu0
  %633 = vmatprep.mubr.f32.mxu0 0.0
  %634 = vmatmul.mubr.f32.gmra.mrb[0].mxu0 %v50
  %v635 = vpop.f32.mrb[0].mxu0
  %v636 = vadd.f32 0.0, %v635
  %v637 = vpop.f32.mrb[0].mxu0
  %638 = vmatprep.mubr.f32.mxu0 0.0
  %639 = vmatmul.mubr.f32.gmra.mrb[0].mxu0 %v53
  %v640 = vpop.f32.mrb[0].mxu0
  %v641 = vadd.f32 0.0, %v640
  %v642 = vpop.f32.mrb[0].mxu0
  %643 = vmatprep.mubr.f32.mxu0 0.0
  %644 = vmatmul.mubr.f32.gmra.mrb[0].mxu0 %v56
  %v645 = vpop.f32.mrb[0].mxu0
  %v646 = vadd.f32 0.0, %v645
  %v647 = vpop.f32.mrb[0].mxu0
  %648 = vmatprep.mubr.f32.mxu0 0.0
  %649 = vmatmul.mubr.f32.gmra.mrb[0].mxu0 %v59
  %v650 = vpop.f32.mrb[0].mxu0
  %v651 = vadd.f32 0.0, %v650
  %v652 = vpop.f32.mrb[0].mxu0
  %653 = vmatprep.mubr.f32.mxu0 0.0
  %654 = vmatmul.mubr.f32.gmra.mrb[0].mxu0 %v62
  %v655 = vpop.f32.mrb[0].mxu0
  %v656 = vadd.f32 0.0, %v655
  %v657 = vpop.f32.mrb[0].mxu0
  %658 = vmatprep.mubr.f32.mxu0 0.0
  %659 = vmatmul.mubr.f32.gmra.mrb[0].mxu0 %v65
  %v660 = vpop.f32.mrb[0].mxu0
  %v661 = vadd.f32 0.0, %v660
  %v662 = vpop.f32.mrb[0].mxu0
  %663 = vdwg.mxu0
  %s664 = scalar_lea.vmem %s1, 128
  %v665 = vld [vmem:[%s664] sm:$0xff]
  %v666 = vld [vmem:[%s664 + $0x8] sm:$0xff]
  %v667 = vld [vmem:[%s664 + $0x10] sm:$0xff]
  %v668 = vld [vmem:[%s664 + $0x18] sm:$0xff]
  %v669 = vld [vmem:[%s664 + $0x20] sm:$0xff]
  %v670 = vld [vmem:[%s664 + $0x28] sm:$0xff]
  %v671 = vld [vmem:[%s664 + $0x30] sm:$0xff]
  %v672 = vld [vmem:[%s664 + $0x38] sm:$0xff]
  %v674 = vsel %vm297, %v665, 0
  %v677 = vsel %vm297, %v666, 0
  %v680 = vsel %vm297, %v667, 0
  %v683 = vsel %vm297, %v668, 0
  %v686 = vsel %vm297, %v669, 0
  %v689 = vsel %vm297, %v670, 0
  %v692 = vsel %vm297, %v671, 0
  %v695 = vsel %vm297, %v672, 0
  %697 = vmatprep.subr.mxu0 0.0
  %698 = vmatpush1.msra.mxu0 %v626
  %699 = vmatprep.subr.mxu0 0.0
  %700 = vmatpush1.msra.mxu0 %v631
  %701 = vmatprep.subr.mxu0 0.0
  %702 = vmatpush1.msra.mxu0 %v636
  %703 = vmatprep.subr.mxu0 0.0
  %704 = vmatpush1.msra.mxu0 %v641
  %705 = vmatprep.subr.mxu0 0.0
  %706 = vmatpush1.msra.mxu0 %v646
  %707 = vmatprep.subr.mxu0 0.0
  %708 = vmatpush1.msra.mxu0 %v651
  %709 = vmatprep.subr.mxu0 0.0
  %710 = vmatpush1.msra.mxu0 %v656
  %711 = vmatprep.subr.mxu0 0.0
  %712 = vmatpush1.msra.mxu0 %v661
  %713 = vmatprep.subr.mxu0 0.0
  %714 = vmatpush1.msra.mxu0 0.0
  %715 = vmatprep.subr.mxu0 0.0
  %716 = vmatpush1.msra.mxu0 0.0
  %717 = vmatprep.subr.mxu0 0.0
  %718 = vmatpush1.msra.mxu0 0.0
  %719 = vmatprep.subr.mxu0 0.0
  %720 = vmatpush1.msra.mxu0 0.0
  %721 = vmatprep.subr.mxu0 0.0
  %722 = vmatpush1.msra.mxu0 0.0
  %723 = vmatprep.subr.mxu0 0.0
  %724 = vmatpush1.msra.mxu0 0.0
  %725 = vmatprep.subr.mxu0 0.0
  %726 = vmatpush1.msra.mxu0 0.0
  %727 = vmatprep.subr.mxu0 0.0
  %728 = vmatpush1.msra.mxu0 0.0
  %729 = vmatprep.subr.mxu0 0.0
  %730 = vmatpush1.msra.mxu0 0.0
  %731 = vmatprep.subr.mxu0 0.0
  %732 = vmatpush1.msra.mxu0 0.0
  %733 = vmatprep.subr.mxu0 0.0
  %734 = vmatpush1.msra.mxu0 0.0
  %735 = vmatprep.subr.mxu0 0.0
  %736 = vmatpush1.msra.mxu0 0.0
  %737 = vmatprep.subr.mxu0 0.0
  %738 = vmatpush1.msra.mxu0 0.0
  %739 = vmatprep.subr.mxu0 0.0
  %740 = vmatpush1.msra.mxu0 0.0
  %741 = vmatprep.subr.mxu0 0.0
  %742 = vmatpush1.msra.mxu0 0.0
  %743 = vmatprep.subr.mxu0 0.0
  %744 = vmatpush1.msra.mxu0 0.0
  %745 = vmatprep.subr.mxu0 0.0
  %746 = vmatpush1.msra.mxu0 0.0
  %747 = vmatprep.subr.mxu0 0.0
  %748 = vmatpush1.msra.mxu0 0.0
  %749 = vmatprep.subr.mxu0 0.0
  %750 = vmatpush1.msra.mxu0 0.0
  %751 = vmatprep.subr.mxu0 0.0
  %752 = vmatpush1.msra.mxu0 0.0
  %753 = vmatprep.subr.mxu0 0.0
  %754 = vmatpush1.msra.mxu0 0.0
  %755 = vmatprep.subr.mxu0 0.0
  %756 = vmatpush1.msra.mxu0 0.0
  %757 = vmatprep.subr.mxu0 0.0
  %758 = vmatpush1.msra.mxu0 0.0
  %759 = vmatprep.subr.mxu0 0.0
  %760 = vmatpush1.msra.mxu0 0.0
  %761 = vmatprep.mubr.f32.mxu0 0.0
  %762 = vmatmul.mubr.f32.gmra.mrb[0].mxu0 %v674
  %v763 = vpop.f32.mrb[0].mxu0
  %v764 = vadd.f32 0.0, %v763
  %v765 = vpop.f32.mrb[0].mxu0
  %766 = vmatprep.mubr.f32.mxu0 0.0
  %767 = vmatmul.mubr.f32.gmra.mrb[0].mxu0 %v677
  %v768 = vpop.f32.mrb[0].mxu0
  %v769 = vadd.f32 0.0, %v768
  %v770 = vpop.f32.mrb[0].mxu0
  %771 = vmatprep.mubr.f32.mxu0 0.0
  %772 = vmatmul.mubr.f32.gmra.mrb[0].mxu0 %v680
  %v773 = vpop.f32.mrb[0].mxu0
  %v774 = vadd.f32 0.0, %v773
  %v775 = vpop.f32.mrb[0].mxu0
  %776 = vmatprep.mubr.f32.mxu0 0.0
  %777 = vmatmul.mubr.f32.gmra.mrb[0].mxu0 %v683
  %v778 = vpop.f32.mrb[0].mxu0
  %v779 = vadd.f32 0.0, %v778
  %v780 = vpop.f32.mrb[0].mxu0
  %781 = vmatprep.mubr.f32.mxu0 0.0
  %782 = vmatmul.mubr.f32.gmra.mrb[0].mxu0 %v686
  %v783 = vpop.f32.mrb[0].mxu0
  %v784 = vadd.f32 0.0, %v783
  %v785 = vpop.f32.mrb[0].mxu0
  %786 = vmatprep.mubr.f32.mxu0 0.0
  %787 = vmatmul.mubr.f32.gmra.mrb[0].mxu0 %v689
  %v788 = vpop.f32.mrb[0].mxu0
  %v789 = vadd.f32 0.0, %v788
  %v790 = vpop.f32.mrb[0].mxu0
  %791 = vmatprep.mubr.f32.mxu0 0.0
  %792 = vmatmul.mubr.f32.gmra.mrb[0].mxu0 %v692
  %v793 = vpop.f32.mrb[0].mxu0
  %v794 = vadd.f32 0.0, %v793
  %v795 = vpop.f32.mrb[0].mxu0
  %796 = vmatprep.mubr.f32.mxu0 0.0
  %797 = vmatmul.mubr.f32.gmra.mrb[0].mxu0 %v695
  %v798 = vpop.f32.mrb[0].mxu0
  %v799 = vadd.f32 0.0, %v798
  %v800 = vpop.f32.mrb[0].mxu0
  %801 = vdwg.mxu0
  %v802 = vadd.f32 %v518, %v764
  %v803 = vadd.f32 %v523, %v769
  %v804 = vadd.f32 %v528, %v774
  %v805 = vadd.f32 %v533, %v779
  %v806 = vadd.f32 %v538, %v784
  %v807 = vadd.f32 %v543, %v789
  %v808 = vadd.f32 %v548, %v794
  %v809 = vadd.f32 %v553, %v799
  %s810 = scalar_lea.vmem %s2, 48
  %v811 = vld [vmem:[%s810] sm:$0xff]
  %v812 = vld [vmem:[%s810 + $0x8] sm:$0xff]
  %813 = vmatprep.subr.mxu0 0.0
  %814 = vmatpush1.msra.mxu0 %v811
  %815 = vmatprep.subr.mxu0 0.0
  %816 = vmatpush1.msra.mxu0 %v812
  %817 = vmatprep.subr.mxu0 0.0
  %818 = vmatpush1.msra.mxu0 0.0
  %819 = vmatprep.subr.mxu0 0.0
  %820 = vmatpush1.msra.mxu0 0.0
  %821 = vmatprep.subr.mxu0 0.0
  %822 = vmatpush1.msra.mxu0 0.0
  %823 = vmatprep.subr.mxu0 0.0
  %824 = vmatpush1.msra.mxu0 0.0
  %825 = vmatprep.subr.mxu0 0.0
  %826 = vmatpush1.msra.mxu0 0.0
  %827 = vmatprep.subr.mxu0 0.0
  %828 = vmatpush1.msra.mxu0 0.0
  %829 = vmatprep.subr.mxu0 0.0
  %830 = vmatpush1.msra.mxu0 0.0
  %831 = vmatprep.subr.mxu0 0.0
  %832 = vmatpush1.msra.mxu0 0.0
  %833 = vmatprep.subr.mxu0 0.0
  %834 = vmatpush1.msra.mxu0 0.0
  %835 = vmatprep.subr.mxu0 0.0
  %836 = vmatpush1.msra.mxu0 0.0
  %837 = vmatprep.subr.mxu0 0.0
  %838 = vmatpush1.msra.mxu0 0.0
  %839 = vmatprep.subr.mxu0 0.0
  %840 = vmatpush1.msra.mxu0 0.0
  %841 = vmatprep.subr.mxu0 0.0
  %842 = vmatpush1.msra.mxu0 0.0
  %843 = vmatprep.subr.mxu0 0.0
  %844 = vmatpush1.msra.mxu0 0.0
  %845 = vmatprep.subr.mxu0 0.0
  %846 = vmatpush1.msra.mxu0 0.0
  %847 = vmatprep.subr.mxu0 0.0
  %848 = vmatpush1.msra.mxu0 0.0
  %849 = vmatprep.subr.mxu0 0.0
  %850 = vmatpush1.msra.mxu0 0.0
  %851 = vmatprep.subr.mxu0 0.0
  %852 = vmatpush1.msra.mxu0 0.0
  %853 = vmatprep.subr.mxu0 0.0
  %854 = vmatpush1.msra.mxu0 0.0
  %855 = vmatprep.subr.mxu0 0.0
  %856 = vmatpush1.msra.mxu0 0.0
  %857 = vmatprep.subr.mxu0 0.0
  %858 = vmatpush1.msra.mxu0 0.0
  %859 = vmatprep.subr.mxu0 0.0
  %860 = vmatpush1.msra.mxu0 0.0
  %861 = vmatprep.subr.mxu0 0.0
  %862 = vmatpush1.msra.mxu0 0.0
  %863 = vmatprep.subr.mxu0 0.0
  %864 = vmatpush1.msra.mxu0 0.0
  %865 = vmatprep.subr.mxu0 0.0
  %866 = vmatpush1.msra.mxu0 0.0
  %867 = vmatprep.subr.mxu0 0.0
  %868 = vmatpush1.msra.mxu0 0.0
  %869 = vmatprep.subr.mxu0 0.0
  %870 = vmatpush1.msra.mxu0 0.0
  %871 = vmatprep.subr.mxu0 0.0
  %872 = vmatpush1.msra.mxu0 0.0
  %873 = vmatprep.subr.mxu0 0.0
  %874 = vmatpush1.msra.mxu0 0.0
  %875 = vmatprep.subr.mxu0 0.0
  %876 = vmatpush1.msra.mxu0 0.0
  %877 = vmatprep.mubr.f32.mxu0 0.0
  %878 = vmatmul.mubr.f32.gmra.mrb[0].mxu0 %v44
  %v879 = vpop.f32.mrb[0].mxu0
  %v880 = vadd.f32 0.0, %v879
  %v881 = vpop.f32.mrb[0].mxu0
  %882 = vmatprep.mubr.f32.mxu0 0.0
  %883 = vmatmul.mubr.f32.gmra.mrb[0].mxu0 %v47
  %v884 = vpop.f32.mrb[0].mxu0
  %v885 = vadd.f32 0.0, %v884
  %v886 = vpop.f32.mrb[0].mxu0
  %887 = vmatprep.mubr.f32.mxu0 0.0
  %888 = vmatmul.mubr.f32.gmra.mrb[0].mxu0 %v50
  %v889 = vpop.f32.mrb[0].mxu0
  %v890 = vadd.f32 0.0, %v889
  %v891 = vpop.f32.mrb[0].mxu0
  %892 = vmatprep.mubr.f32.mxu0 0.0
  %893 = vmatmul.mubr.f32.gmra.mrb[0].mxu0 %v53
  %v894 = vpop.f32.mrb[0].mxu0
  %v895 = vadd.f32 0.0, %v894
  %v896 = vpop.f32.mrb[0].mxu0
  %897 = vmatprep.mubr.f32.mxu0 0.0
  %898 = vmatmul.mubr.f32.gmra.mrb[0].mxu0 %v56
  %v899 = vpop.f32.mrb[0].mxu0
  %v900 = vadd.f32 0.0, %v899
  %v901 = vpop.f32.mrb[0].mxu0
  %902 = vmatprep.mubr.f32.mxu0 0.0
  %903 = vmatmul.mubr.f32.gmra.mrb[0].mxu0 %v59
  %v904 = vpop.f32.mrb[0].mxu0
  %v905 = vadd.f32 0.0, %v904
  %v906 = vpop.f32.mrb[0].mxu0
  %907 = vmatprep.mubr.f32.mxu0 0.0
  %908 = vmatmul.mubr.f32.gmra.mrb[0].mxu0 %v62
  %v909 = vpop.f32.mrb[0].mxu0
  %v910 = vadd.f32 0.0, %v909
  %v911 = vpop.f32.mrb[0].mxu0
  %912 = vmatprep.mubr.f32.mxu0 0.0
  %913 = vmatmul.mubr.f32.gmra.mrb[0].mxu0 %v65
  %v914 = vpop.f32.mrb[0].mxu0
  %v915 = vadd.f32 0.0, %v914
  %v916 = vpop.f32.mrb[0].mxu0
  %917 = vdwg.mxu0
  %s918 = scalar_lea.vmem %s1, 192
  %v919 = vld [vmem:[%s918] sm:$0xff]
  %v920 = vld [vmem:[%s918 + $0x8] sm:$0xff]
  %v921 = vld [vmem:[%s918 + $0x10] sm:$0xff]
  %v922 = vld [vmem:[%s918 + $0x18] sm:$0xff]
  %v923 = vld [vmem:[%s918 + $0x20] sm:$0xff]
  %v924 = vld [vmem:[%s918 + $0x28] sm:$0xff]
  %v925 = vld [vmem:[%s918 + $0x30] sm:$0xff]
  %v926 = vld [vmem:[%s918 + $0x38] sm:$0xff]
  %v928 = vsel %vm297, %v919, 0
  %v931 = vsel %vm297, %v920, 0
  %v934 = vsel %vm297, %v921, 0
  %v937 = vsel %vm297, %v922, 0
  %v940 = vsel %vm297, %v923, 0
  %v943 = vsel %vm297, %v924, 0
  %v946 = vsel %vm297, %v925, 0
  %v949 = vsel %vm297, %v926, 0
  %951 = vmatprep.subr.mxu0 0.0
  %952 = vmatpush1.msra.mxu0 %v880
  %953 = vmatprep.subr.mxu0 0.0
  %954 = vmatpush1.msra.mxu0 %v885
  %955 = vmatprep.subr.mxu0 0.0
  %956 = vmatpush1.msra.mxu0 %v890
  %957 = vmatprep.subr.mxu0 0.0
  %958 = vmatpush1.msra.mxu0 %v895
  %959 = vmatprep.subr.mxu0 0.0
  %960 = vmatpush1.msra.mxu0 %v900
  %961 = vmatprep.subr.mxu0 0.0
  %962 = vmatpush1.msra.mxu0 %v905
  %963 = vmatprep.subr.mxu0 0.0
  %964 = vmatpush1.msra.mxu0 %v910
  %965 = vmatprep.subr.mxu0 0.0
  %966 = vmatpush1.msra.mxu0 %v915
  %967 = vmatprep.subr.mxu0 0.0
  %968 = vmatpush1.msra.mxu0 0.0
  %969 = vmatprep.subr.mxu0 0.0
  %970 = vmatpush1.msra.mxu0 0.0
  %971 = vmatprep.subr.mxu0 0.0
  %972 = vmatpush1.msra.mxu0 0.0
  %973 = vmatprep.subr.mxu0 0.0
  %974 = vmatpush1.msra.mxu0 0.0
  %975 = vmatprep.subr.mxu0 0.0
  %976 = vmatpush1.msra.mxu0 0.0
  %977 = vmatprep.subr.mxu0 0.0
  %978 = vmatpush1.msra.mxu0 0.0
  %979 = vmatprep.subr.mxu0 0.0
  %980 = vmatpush1.msra.mxu0 0.0
  %981 = vmatprep.subr.mxu0 0.0
  %982 = vmatpush1.msra.mxu0 0.0
  %983 = vmatprep.subr.mxu0 0.0
  %984 = vmatpush1.msra.mxu0 0.0
  %985 = vmatprep.subr.mxu0 0.0
  %986 = vmatpush1.msra.mxu0 0.0
  %987 = vmatprep.subr.mxu0 0.0
  %988 = vmatpush1.msra.mxu0 0.0
  %989 = vmatprep.subr.mxu0 0.0
  %990 = vmatpush1.msra.mxu0 0.0
  %991 = vmatprep.subr.mxu0 0.0
  %992 = vmatpush1.msra.mxu0 0.0
  %993 = vmatprep.subr.mxu0 0.0
  %994 = vmatpush1.msra.mxu0 0.0
  %995 = vmatprep.subr.mxu0 0.0
  %996 = vmatpush1.msra.mxu0 0.0
  %997 = vmatprep.subr.mxu0 0.0
  %998 = vmatpush1.msra.mxu0 0.0
  %999 = vmatprep.subr.mxu0 0.0
  %1000 = vmatpush1.msra.mxu0 0.0
  %1001 = vmatprep.subr.mxu0 0.0
  %1002 = vmatpush1.msra.mxu0 0.0
  %1003 = vmatprep.subr.mxu0 0.0
  %1004 = vmatpush1.msra.mxu0 0.0
  %1005 = vmatprep.subr.mxu0 0.0
  %1006 = vmatpush1.msra.mxu0 0.0
  %1007 = vmatprep.subr.mxu0 0.0
  %1008 = vmatpush1.msra.mxu0 0.0
  %1009 = vmatprep.subr.mxu0 0.0
  %1010 = vmatpush1.msra.mxu0 0.0
  %1011 = vmatprep.subr.mxu0 0.0
  %1012 = vmatpush1.msra.mxu0 0.0
  %1013 = vmatprep.subr.mxu0 0.0
  %1014 = vmatpush1.msra.mxu0 0.0
  %1015 = vmatprep.mubr.f32.mxu0 0.0
  %1016 = vmatmul.mubr.f32.gmra.mrb[0].mxu0 %v928
  %v1017 = vpop.f32.mrb[0].mxu0
  %v1018 = vadd.f32 0.0, %v1017
  %v1019 = vpop.f32.mrb[0].mxu0
  %1020 = vmatprep.mubr.f32.mxu0 0.0
  %1021 = vmatmul.mubr.f32.gmra.mrb[0].mxu0 %v931
  %v1022 = vpop.f32.mrb[0].mxu0
  %v1023 = vadd.f32 0.0, %v1022
  %v1024 = vpop.f32.mrb[0].mxu0
  %1025 = vmatprep.mubr.f32.mxu0 0.0
  %1026 = vmatmul.mubr.f32.gmra.mrb[0].mxu0 %v934
  %v1027 = vpop.f32.mrb[0].mxu0
  %v1028 = vadd.f32 0.0, %v1027
  %v1029 = vpop.f32.mrb[0].mxu0
  %1030 = vmatprep.mubr.f32.mxu0 0.0
  %1031 = vmatmul.mubr.f32.gmra.mrb[0].mxu0 %v937
  %v1032 = vpop.f32.mrb[0].mxu0
  %v1033 = vadd.f32 0.0, %v1032
  %v1034 = vpop.f32.mrb[0].mxu0
  %1035 = vmatprep.mubr.f32.mxu0 0.0
  %1036 = vmatmul.mubr.f32.gmra.mrb[0].mxu0 %v940
  %v1037 = vpop.f32.mrb[0].mxu0
  %v1038 = vadd.f32 0.0, %v1037
  %v1039 = vpop.f32.mrb[0].mxu0
  %1040 = vmatprep.mubr.f32.mxu0 0.0
  %1041 = vmatmul.mubr.f32.gmra.mrb[0].mxu0 %v943
  %v1042 = vpop.f32.mrb[0].mxu0
  %v1043 = vadd.f32 0.0, %v1042
  %v1044 = vpop.f32.mrb[0].mxu0
  %1045 = vmatprep.mubr.f32.mxu0 0.0
  %1046 = vmatmul.mubr.f32.gmra.mrb[0].mxu0 %v946
  %v1047 = vpop.f32.mrb[0].mxu0
  %v1048 = vadd.f32 0.0, %v1047
  %v1049 = vpop.f32.mrb[0].mxu0
  %1050 = vmatprep.mubr.f32.mxu0 0.0
  %1051 = vmatmul.mubr.f32.gmra.mrb[0].mxu0 %v949
  %v1052 = vpop.f32.mrb[0].mxu0
  %v1053 = vadd.f32 0.0, %v1052
  %v1054 = vpop.f32.mrb[0].mxu0
  %1055 = vdwg.mxu0
  %v1056 = vadd.f32 %v802, %v1018
  %v1057 = vadd.f32 %v803, %v1023
  %v1058 = vadd.f32 %v804, %v1028
  %v1059 = vadd.f32 %v805, %v1033
  %v1060 = vadd.f32 %v806, %v1038
  %v1061 = vadd.f32 %v807, %v1043
  %v1062 = vadd.f32 %v808, %v1048
  %v1063 = vadd.f32 %v809, %v1053
  %v1064 = vld [vmem:[%s3] sm:$0xff]
  %v1065 = vld [vmem:[%s3 + $0x8] sm:$0xff]
  %v1066 = vld [vmem:[%s3 + $0x10] sm:$0xff]
  %v1067 = vld [vmem:[%s3 + $0x18] sm:$0xff]
  %v1068 = vld [vmem:[%s3 + $0x20] sm:$0xff]
  %v1069 = vld [vmem:[%s3 + $0x28] sm:$0xff]
  %v1070 = vld [vmem:[%s3 + $0x30] sm:$0xff]
  %v1071 = vld [vmem:[%s3 + $0x38] sm:$0xff]
  %v1073 = vsel %vm297, %v1064, 0
  %v1076 = vsel %vm297, %v1065, 0
  %v1079 = vsel %vm297, %v1066, 0
  %v1082 = vsel %vm297, %v1067, 0
  %v1085 = vsel %vm297, %v1068, 0
  %v1088 = vsel %vm297, %v1069, 0
  %v1091 = vsel %vm297, %v1070, 0
  %v1094 = vsel %vm297, %v1071, 0
  %1096 = vmatprep.subr.mxu0 0.0
  %1097 = vmatpush1.msra.mxu0 %v1056
  %1098 = vmatprep.subr.mxu0 0.0
  %1099 = vmatpush1.msra.mxu0 %v1057
  %1100 = vmatprep.subr.mxu0 0.0
  %1101 = vmatpush1.msra.mxu0 %v1058
  %1102 = vmatprep.subr.mxu0 0.0
  %1103 = vmatpush1.msra.mxu0 %v1059
  %1104 = vmatprep.subr.mxu0 0.0
  %1105 = vmatpush1.msra.mxu0 %v1060
  %1106 = vmatprep.subr.mxu0 0.0
  %1107 = vmatpush1.msra.mxu0 %v1061
  %1108 = vmatprep.subr.mxu0 0.0
  %1109 = vmatpush1.msra.mxu0 %v1062
  %1110 = vmatprep.subr.mxu0 0.0
  %1111 = vmatpush1.msra.mxu0 %v1063
  %1112 = vmatprep.subr.mxu0 0.0
  %1113 = vmatpush1.msra.mxu0 0.0
  %1114 = vmatprep.subr.mxu0 0.0
  %1115 = vmatpush1.msra.mxu0 0.0
  %1116 = vmatprep.subr.mxu0 0.0
  %1117 = vmatpush1.msra.mxu0 0.0
  %1118 = vmatprep.subr.mxu0 0.0
  %1119 = vmatpush1.msra.mxu0 0.0
  %1120 = vmatprep.subr.mxu0 0.0
  %1121 = vmatpush1.msra.mxu0 0.0
  %1122 = vmatprep.subr.mxu0 0.0
  %1123 = vmatpush1.msra.mxu0 0.0
  %1124 = vmatprep.subr.mxu0 0.0
  %1125 = vmatpush1.msra.mxu0 0.0
  %1126 = vmatprep.subr.mxu0 0.0
  %1127 = vmatpush1.msra.mxu0 0.0
  %1128 = vmatprep.subr.mxu0 0.0
  %1129 = vmatpush1.msra.mxu0 0.0
  %1130 = vmatprep.subr.mxu0 0.0
  %1131 = vmatpush1.msra.mxu0 0.0
  %1132 = vmatprep.subr.mxu0 0.0
  %1133 = vmatpush1.msra.mxu0 0.0
  %1134 = vmatprep.subr.mxu0 0.0
  %1135 = vmatpush1.msra.mxu0 0.0
  %1136 = vmatprep.subr.mxu0 0.0
  %1137 = vmatpush1.msra.mxu0 0.0
  %1138 = vmatprep.subr.mxu0 0.0
  %1139 = vmatpush1.msra.mxu0 0.0
  %1140 = vmatprep.subr.mxu0 0.0
  %1141 = vmatpush1.msra.mxu0 0.0
  %1142 = vmatprep.subr.mxu0 0.0
  %1143 = vmatpush1.msra.mxu0 0.0
  %1144 = vmatprep.subr.mxu0 0.0
  %1145 = vmatpush1.msra.mxu0 0.0
  %1146 = vmatprep.subr.mxu0 0.0
  %1147 = vmatpush1.msra.mxu0 0.0
  %1148 = vmatprep.subr.mxu0 0.0
  %1149 = vmatpush1.msra.mxu0 0.0
  %1150 = vmatprep.subr.mxu0 0.0
  %1151 = vmatpush1.msra.mxu0 0.0
  %1152 = vmatprep.subr.mxu0 0.0
  %1153 = vmatpush1.msra.mxu0 0.0
  %1154 = vmatprep.subr.mxu0 0.0
  %1155 = vmatpush1.msra.mxu0 0.0
  %1156 = vmatprep.subr.mxu0 0.0
  %1157 = vmatpush1.msra.mxu0 0.0
  %1158 = vmatprep.subr.mxu0 0.0
  %1159 = vmatpush1.msra.mxu0 0.0
  %1160 = vmatprep.mubr.f32.mxu0 0.0
  %1161 = vmatmul.mubr.f32.gmra.mrb[0].mxu0 %v1073
  %v1162 = vpop.f32.mrb[0].mxu0
  %v1163 = vadd.f32 0.0, %v1162
  %v1164 = vpop.f32.mrb[0].mxu0
  %1165 = vmatprep.mubr.f32.mxu0 0.0
  %1166 = vmatmul.mubr.f32.gmra.mrb[0].mxu0 %v1076
  %v1167 = vpop.f32.mrb[0].mxu0
  %v1168 = vadd.f32 0.0, %v1167
  %v1169 = vpop.f32.mrb[0].mxu0
  %1170 = vmatprep.mubr.f32.mxu0 0.0
  %1171 = vmatmul.mubr.f32.gmra.mrb[0].mxu0 %v1079
  %v1172 = vpop.f32.mrb[0].mxu0
  %v1173 = vadd.f32 0.0, %v1172
  %v1174 = vpop.f32.mrb[0].mxu0
  %1175 = vmatprep.mubr.f32.mxu0 0.0
  %1176 = vmatmul.mubr.f32.gmra.mrb[0].mxu0 %v1082
  %v1177 = vpop.f32.mrb[0].mxu0
  %v1178 = vadd.f32 0.0, %v1177
  %v1179 = vpop.f32.mrb[0].mxu0
  %1180 = vmatprep.mubr.f32.mxu0 0.0
  %1181 = vmatmul.mubr.f32.gmra.mrb[0].mxu0 %v1085
  %v1182 = vpop.f32.mrb[0].mxu0
  %v1183 = vadd.f32 0.0, %v1182
  %v1184 = vpop.f32.mrb[0].mxu0
  %1185 = vmatprep.mubr.f32.mxu0 0.0
  %1186 = vmatmul.mubr.f32.gmra.mrb[0].mxu0 %v1088
  %v1187 = vpop.f32.mrb[0].mxu0
  %v1188 = vadd.f32 0.0, %v1187
  %v1189 = vpop.f32.mrb[0].mxu0
  %1190 = vmatprep.mubr.f32.mxu0 0.0
  %1191 = vmatmul.mubr.f32.gmra.mrb[0].mxu0 %v1091
  %v1192 = vpop.f32.mrb[0].mxu0
  %v1193 = vadd.f32 0.0, %v1192
  %v1194 = vpop.f32.mrb[0].mxu0
  %1195 = vmatprep.mubr.f32.mxu0 0.0
  %1196 = vmatmul.mubr.f32.gmra.mrb[0].mxu0 %v1094
  %v1197 = vpop.f32.mrb[0].mxu0
  %v1198 = vadd.f32 0.0, %v1197
  %v1199 = vpop.f32.mrb[0].mxu0
  %1200 = vdwg.mxu0
  %vm1201 = vcmask 261120
  %v1202 = vsel %vm1201, %v1163, 0.0
  %1203 = vadd.xlane.f32.xlu0 %v1202
  %v1204 = vpop.xlane.xlu0 %1203
  %v1205 = vsel %vm1201, %v1168, 0.0
  %1206 = vadd.xlane.f32.xlu0 %v1205
  %v1207 = vpop.xlane.xlu0 %1206
  %v1208 = vsel %vm1201, %v1173, 0.0
  %1209 = vadd.xlane.f32.xlu0 %v1208
  %v1210 = vpop.xlane.xlu0 %1209
  %v1211 = vsel %vm1201, %v1178, 0.0
  %1212 = vadd.xlane.f32.xlu0 %v1211
  %v1213 = vpop.xlane.xlu0 %1212
  %v1214 = vsel %vm1201, %v1183, 0.0
  %1215 = vadd.xlane.f32.xlu0 %v1214
  %v1216 = vpop.xlane.xlu0 %1215
  %v1217 = vsel %vm1201, %v1188, 0.0
  %1218 = vadd.xlane.f32.xlu0 %v1217
  %v1219 = vpop.xlane.xlu0 %1218
  %v1220 = vsel %vm1201, %v1193, 0.0
  %1221 = vadd.xlane.f32.xlu0 %v1220
  %v1222 = vpop.xlane.xlu0 %1221
  %v1223 = vsel %vm1201, %v1198, 0.0
  %1224 = vadd.xlane.f32.xlu0 %v1223
  %v1225 = vpop.xlane.xlu0 %1224
  %v1226 = vsub.f32 %v1056, %v1204
  %v1227 = vsub.f32 %v1057, %v1207
  %v1228 = vsub.f32 %v1058, %v1210
  %v1229 = vsub.f32 %v1059, %v1213
  %v1230 = vsub.f32 %v1060, %v1216
  %v1231 = vsub.f32 %v1061, %v1219
  %v1232 = vsub.f32 %v1062, %v1222
  %v1233 = vsub.f32 %v1063, %v1225
  %v1234 = vmul.f32 %v1226, %v1226
  %v1235 = vmul.f32 %v1227, %v1227
  %v1236 = vmul.f32 %v1228, %v1228
  %v1237 = vmul.f32 %v1229, %v1229
  %v1238 = vmul.f32 %v1230, %v1230
  %v1239 = vmul.f32 %v1231, %v1231
  %v1240 = vmul.f32 %v1232, %v1232
  %v1241 = vmul.f32 %v1233, %v1233
  %1242 = vmatprep.subr.mxu0 0.0
  %1243 = vmatpush1.msra.mxu0 %v1234
  %1244 = vmatprep.subr.mxu0 0.0
  %1245 = vmatpush1.msra.mxu0 %v1235
  %1246 = vmatprep.subr.mxu0 0.0
  %1247 = vmatpush1.msra.mxu0 %v1236
  %1248 = vmatprep.subr.mxu0 0.0
  %1249 = vmatpush1.msra.mxu0 %v1237
  %1250 = vmatprep.subr.mxu0 0.0
  %1251 = vmatpush1.msra.mxu0 %v1238
  %1252 = vmatprep.subr.mxu0 0.0
  %1253 = vmatpush1.msra.mxu0 %v1239
  %1254 = vmatprep.subr.mxu0 0.0
  %1255 = vmatpush1.msra.mxu0 %v1240
  %1256 = vmatprep.subr.mxu0 0.0
  %1257 = vmatpush1.msra.mxu0 %v1241
  %1258 = vmatprep.subr.mxu0 0.0
  %1259 = vmatpush1.msra.mxu0 0.0
  %1260 = vmatprep.subr.mxu0 0.0
  %1261 = vmatpush1.msra.mxu0 0.0
  %1262 = vmatprep.subr.mxu0 0.0
  %1263 = vmatpush1.msra.mxu0 0.0
  %1264 = vmatprep.subr.mxu0 0.0
  %1265 = vmatpush1.msra.mxu0 0.0
  %1266 = vmatprep.subr.mxu0 0.0
  %1267 = vmatpush1.msra.mxu0 0.0
  %1268 = vmatprep.subr.mxu0 0.0
  %1269 = vmatpush1.msra.mxu0 0.0
  %1270 = vmatprep.subr.mxu0 0.0
  %1271 = vmatpush1.msra.mxu0 0.0
  %1272 = vmatprep.subr.mxu0 0.0
  %1273 = vmatpush1.msra.mxu0 0.0
  %1274 = vmatprep.subr.mxu0 0.0
  %1275 = vmatpush1.msra.mxu0 0.0
  %1276 = vmatprep.subr.mxu0 0.0
  %1277 = vmatpush1.msra.mxu0 0.0
  %1278 = vmatprep.subr.mxu0 0.0
  %1279 = vmatpush1.msra.mxu0 0.0
  %1280 = vmatprep.subr.mxu0 0.0
  %1281 = vmatpush1.msra.mxu0 0.0
  %1282 = vmatprep.subr.mxu0 0.0
  %1283 = vmatpush1.msra.mxu0 0.0
  %1284 = vmatprep.subr.mxu0 0.0
  %1285 = vmatpush1.msra.mxu0 0.0
  %1286 = vmatprep.subr.mxu0 0.0
  %1287 = vmatpush1.msra.mxu0 0.0
  %1288 = vmatprep.subr.mxu0 0.0
  %1289 = vmatpush1.msra.mxu0 0.0
  %1290 = vmatprep.subr.mxu0 0.0
  %1291 = vmatpush1.msra.mxu0 0.0
  %1292 = vmatprep.subr.mxu0 0.0
  %1293 = vmatpush1.msra.mxu0 0.0
  %1294 = vmatprep.subr.mxu0 0.0
  %1295 = vmatpush1.msra.mxu0 0.0
  %1296 = vmatprep.subr.mxu0 0.0
  %1297 = vmatpush1.msra.mxu0 0.0
  %1298 = vmatprep.subr.mxu0 0.0
  %1299 = vmatpush1.msra.mxu0 0.0
  %1300 = vmatprep.subr.mxu0 0.0
  %1301 = vmatpush1.msra.mxu0 0.0
  %1302 = vmatprep.subr.mxu0 0.0
  %1303 = vmatpush1.msra.mxu0 0.0
  %1304 = vmatprep.subr.mxu0 0.0
  %1305 = vmatpush1.msra.mxu0 0.0
  %1306 = vmatprep.mubr.f32.mxu0 0.0
  %1307 = vmatmul.mubr.f32.gmra.mrb[0].mxu0 %v1073
  %v1308 = vpop.f32.mrb[0].mxu0
  %v1309 = vadd.f32 0.0, %v1308
  %v1310 = vpop.f32.mrb[0].mxu0
  %1311 = vmatprep.mubr.f32.mxu0 0.0
  %1312 = vmatmul.mubr.f32.gmra.mrb[0].mxu0 %v1076
  %v1313 = vpop.f32.mrb[0].mxu0
  %v1314 = vadd.f32 0.0, %v1313
  %v1315 = vpop.f32.mrb[0].mxu0
  %1316 = vmatprep.mubr.f32.mxu0 0.0
  %1317 = vmatmul.mubr.f32.gmra.mrb[0].mxu0 %v1079
  %v1318 = vpop.f32.mrb[0].mxu0
  %v1319 = vadd.f32 0.0, %v1318
  %v1320 = vpop.f32.mrb[0].mxu0
  %1321 = vmatprep.mubr.f32.mxu0 0.0
  %1322 = vmatmul.mubr.f32.gmra.mrb[0].mxu0 %v1082
  %v1323 = vpop.f32.mrb[0].mxu0
  %v1324 = vadd.f32 0.0, %v1323
  %v1325 = vpop.f32.mrb[0].mxu0
  %1326 = vmatprep.mubr.f32.mxu0 0.0
  %1327 = vmatmul.mubr.f32.gmra.mrb[0].mxu0 %v1085
  %v1328 = vpop.f32.mrb[0].mxu0
  %v1329 = vadd.f32 0.0, %v1328
  %v1330 = vpop.f32.mrb[0].mxu0
  %1331 = vmatprep.mubr.f32.mxu0 0.0
  %1332 = vmatmul.mubr.f32.gmra.mrb[0].mxu0 %v1088
  %v1333 = vpop.f32.mrb[0].mxu0
  %v1334 = vadd.f32 0.0, %v1333
  %v1335 = vpop.f32.mrb[0].mxu0
  %1336 = vmatprep.mubr.f32.mxu0 0.0
  %1337 = vmatmul.mubr.f32.gmra.mrb[0].mxu0 %v1091
  %v1338 = vpop.f32.mrb[0].mxu0
  %v1339 = vadd.f32 0.0, %v1338
  %v1340 = vpop.f32.mrb[0].mxu0
  %1341 = vmatprep.mubr.f32.mxu0 0.0
  %1342 = vmatmul.mubr.f32.gmra.mrb[0].mxu0 %v1094
  %v1343 = vpop.f32.mrb[0].mxu0
  %v1344 = vadd.f32 0.0, %v1343
  %v1345 = vpop.f32.mrb[0].mxu0
  %1346 = vdwg.mxu0
  %v1347 = vsel %vm1201, %v1309, 0.0
  %1348 = vadd.xlane.f32.xlu0 %v1347
  %v1349 = vpop.xlane.xlu0 %1348
  %v1350 = vsel %vm1201, %v1314, 0.0
  %1351 = vadd.xlane.f32.xlu0 %v1350
  %v1352 = vpop.xlane.xlu0 %1351
  %v1353 = vsel %vm1201, %v1319, 0.0
  %1354 = vadd.xlane.f32.xlu0 %v1353
  %v1355 = vpop.xlane.xlu0 %1354
  %v1356 = vsel %vm1201, %v1324, 0.0
  %1357 = vadd.xlane.f32.xlu0 %v1356
  %v1358 = vpop.xlane.xlu0 %1357
  %v1359 = vsel %vm1201, %v1329, 0.0
  %1360 = vadd.xlane.f32.xlu0 %v1359
  %v1361 = vpop.xlane.xlu0 %1360
  %v1362 = vsel %vm1201, %v1334, 0.0
  %1363 = vadd.xlane.f32.xlu0 %v1362
  %v1364 = vpop.xlane.xlu0 %1363
  %v1365 = vsel %vm1201, %v1339, 0.0
  %1366 = vadd.xlane.f32.xlu0 %v1365
  %v1367 = vpop.xlane.xlu0 %1366
  %v1368 = vsel %vm1201, %v1344, 0.0
  %1369 = vadd.xlane.f32.xlu0 %v1368
  %v1370 = vpop.xlane.xlu0 %1369
  %v1371 = vld [vmem:[%s4] sm:$0xff]
  %v1372 = vld [vmem:[%s4 + $0x8] sm:$0xff]
  %v1373 = vld [vmem:[%s4 + $0x10] sm:$0xff]
  %v1374 = vld [vmem:[%s4 + $0x18] sm:$0xff]
  %v1375 = vld [vmem:[%s4 + $0x20] sm:$0xff]
  %v1376 = vld [vmem:[%s4 + $0x28] sm:$0xff]
  %v1377 = vld [vmem:[%s4 + $0x30] sm:$0xff]
  %v1378 = vld [vmem:[%s4 + $0x38] sm:$0xff]
  %v1379 = vadd.f32 %v1349, 1e-05
  %v1380 = vadd.f32 %v1352, 1e-05
  %v1381 = vadd.f32 %v1355, 1e-05
  %v1382 = vadd.f32 %v1358, 1e-05
  %v1383 = vadd.f32 %v1361, 1e-05
  %v1384 = vadd.f32 %v1364, 1e-05
  %v1385 = vadd.f32 %v1367, 1e-05
  %v1386 = vadd.f32 %v1370, 1e-05
  %v1387 = vrsqrt.pop %v1379
  %v1388 = vrsqrt.pop %v1380
  %v1389 = vrsqrt.pop %v1381
  %v1390 = vrsqrt.pop %v1382
  %v1391 = vrsqrt.pop %v1383
  %v1392 = vrsqrt.pop %v1384
  %v1393 = vrsqrt.pop %v1385
  %v1394 = vrsqrt.pop %v1386
  %v1395 = vmul.f32 %v1371, %v1387
  %v1396 = vmul.f32 %v1372, %v1388
  %v1397 = vmul.f32 %v1373, %v1389
  %v1398 = vmul.f32 %v1374, %v1390
  %v1399 = vmul.f32 %v1375, %v1391
  %v1400 = vmul.f32 %v1376, %v1392
  %v1401 = vmul.f32 %v1377, %v1393
  %v1402 = vmul.f32 %v1378, %v1394
  %1404 = vset.pattern.permute.xlu0 0
  %1405 = vperm.xlu0 %1404, %v1395
  %v1406 = vpop.permute.xlu0 %1405
  %1409 = vset.pattern.permute.xlu0 0
  %1410 = vperm.xlu0 %1409, %v1396
  %v1411 = vpop.permute.xlu0 %1410
  %1414 = vset.pattern.permute.xlu0 0
  %1415 = vperm.xlu0 %1414, %v1397
  %v1416 = vpop.permute.xlu0 %1415
  %1419 = vset.pattern.permute.xlu0 0
  %1420 = vperm.xlu0 %1419, %v1398
  %v1421 = vpop.permute.xlu0 %1420
  %1424 = vset.pattern.permute.xlu0 0
  %1425 = vperm.xlu0 %1424, %v1399
  %v1426 = vpop.permute.xlu0 %1425
  %1429 = vset.pattern.permute.xlu0 0
  %1430 = vperm.xlu0 %1429, %v1400
  %v1431 = vpop.permute.xlu0 %1430
  %1434 = vset.pattern.permute.xlu0 0
  %1435 = vperm.xlu0 %1434, %v1401
  %v1436 = vpop.permute.xlu0 %1435
  %1439 = vset.pattern.permute.xlu0 0
  %1440 = vperm.xlu0 %1439, %v1402
  %v1441 = vpop.permute.xlu0 %1440
  %v1443 = vmul.f32 %v1226, %v1406
  %v1444 = vmul.f32 %v1227, %v1411
  %v1445 = vmul.f32 %v1228, %v1416
  %v1446 = vmul.f32 %v1229, %v1421
  %v1447 = vmul.f32 %v1230, %v1426
  %v1448 = vmul.f32 %v1231, %v1431
  %v1449 = vmul.f32 %v1232, %v1436
  %v1450 = vmul.f32 %v1233, %v1441
  %v1451 = vld [vmem:[%s5] sm:$0xff]
  %v1452 = vld [vmem:[%s5 + $0x8] sm:$0xff]
  %v1453 = vld [vmem:[%s5 + $0x10] sm:$0xff]
  %v1454 = vld [vmem:[%s5 + $0x18] sm:$0xff]
  %v1455 = vld [vmem:[%s5 + $0x20] sm:$0xff]
  %v1456 = vld [vmem:[%s5 + $0x28] sm:$0xff]
  %v1457 = vld [vmem:[%s5 + $0x30] sm:$0xff]
  %v1458 = vld [vmem:[%s5 + $0x38] sm:$0xff]
  %1460 = vset.pattern.permute.xlu0 0
  %1461 = vperm.xlu0 %1460, %v1451
  %v1462 = vpop.permute.xlu0 %1461
  %1465 = vset.pattern.permute.xlu0 0
  %1466 = vperm.xlu0 %1465, %v1452
  %v1467 = vpop.permute.xlu0 %1466
  %1470 = vset.pattern.permute.xlu0 0
  %1471 = vperm.xlu0 %1470, %v1453
  %v1472 = vpop.permute.xlu0 %1471
  %1475 = vset.pattern.permute.xlu0 0
  %1476 = vperm.xlu0 %1475, %v1454
  %v1477 = vpop.permute.xlu0 %1476
  %1480 = vset.pattern.permute.xlu0 0
  %1481 = vperm.xlu0 %1480, %v1455
  %v1482 = vpop.permute.xlu0 %1481
  %1485 = vset.pattern.permute.xlu0 0
  %1486 = vperm.xlu0 %1485, %v1456
  %v1487 = vpop.permute.xlu0 %1486
  %1490 = vset.pattern.permute.xlu0 0
  %1491 = vperm.xlu0 %1490, %v1457
  %v1492 = vpop.permute.xlu0 %1491
  %1495 = vset.pattern.permute.xlu0 0
  %1496 = vperm.xlu0 %1495, %v1458
  %v1497 = vpop.permute.xlu0 %1496
  %v1499 = vadd.f32 %v1443, %v1462
  %v1500 = vadd.f32 %v1444, %v1467
  %v1501 = vadd.f32 %v1445, %v1472
  %v1502 = vadd.f32 %v1446, %v1477
  %v1503 = vadd.f32 %v1447, %v1482
  %v1504 = vadd.f32 %v1448, %v1487
  %v1505 = vadd.f32 %v1449, %v1492
  %v1506 = vadd.f32 %v1450, %v1497
  %v1507 = vmax.f32 %v1499, 0.0
  %v1508 = vmax.f32 %v1500, 0.0
  %v1509 = vmax.f32 %v1501, 0.0
  %v1510 = vmax.f32 %v1502, 0.0
  %v1511 = vmax.f32 %v1503, 0.0
  %v1512 = vmax.f32 %v1504, 0.0
  %v1513 = vmax.f32 %v1505, 0.0
  %v1514 = vmax.f32 %v1506, 0.0
  %v1515 = vld [vmem:[%s7] sm:$0xff]
  %v1516 = vld [vmem:[%s7 + $0x8] sm:$0xff]
  %v1517 = vld [vmem:[%s7 + $0x10] sm:$0xff]
  %v1518 = vld [vmem:[%s7 + $0x18] sm:$0xff]
  %v1520 = vsel %vm1201, %v1507, 0
  %v1523 = vsel %vm1201, %v1508, 0
  %v1526 = vsel %vm1201, %v1509, 0
  %v1529 = vsel %vm1201, %v1510, 0
  %v1532 = vsel %vm1201, %v1511, 0
  %v1535 = vsel %vm1201, %v1512, 0
  %v1538 = vsel %vm1201, %v1513, 0
  %v1541 = vsel %vm1201, %v1514, 0
  %1543 = vmatprep.subr.mxu0 0.0
  %1544 = vmatpush1.msra.mxu0 %v1515
  %1545 = vmatprep.subr.mxu0 0.0
  %1546 = vmatpush1.msra.mxu0 %v1516
  %1547 = vmatprep.subr.mxu0 0.0
  %1548 = vmatpush1.msra.mxu0 %v1517
  %1549 = vmatprep.subr.mxu0 0.0
  %1550 = vmatpush1.msra.mxu0 %v1518
  %1551 = vmatprep.subr.mxu0 0.0
  %1552 = vmatpush1.msra.mxu0 0.0
  %1553 = vmatprep.subr.mxu0 0.0
  %1554 = vmatpush1.msra.mxu0 0.0
  %1555 = vmatprep.subr.mxu0 0.0
  %1556 = vmatpush1.msra.mxu0 0.0
  %1557 = vmatprep.subr.mxu0 0.0
  %1558 = vmatpush1.msra.mxu0 0.0
  %1559 = vmatprep.subr.mxu0 0.0
  %1560 = vmatpush1.msra.mxu0 0.0
  %1561 = vmatprep.subr.mxu0 0.0
  %1562 = vmatpush1.msra.mxu0 0.0
  %1563 = vmatprep.subr.mxu0 0.0
  %1564 = vmatpush1.msra.mxu0 0.0
  %1565 = vmatprep.subr.mxu0 0.0
  %1566 = vmatpush1.msra.mxu0 0.0
  %1567 = vmatprep.subr.mxu0 0.0
  %1568 = vmatpush1.msra.mxu0 0.0
  %1569 = vmatprep.subr.mxu0 0.0
  %1570 = vmatpush1.msra.mxu0 0.0
  %1571 = vmatprep.subr.mxu0 0.0
  %1572 = vmatpush1.msra.mxu0 0.0
  %1573 = vmatprep.subr.mxu0 0.0
  %1574 = vmatpush1.msra.mxu0 0.0
  %1575 = vmatprep.subr.mxu0 0.0
  %1576 = vmatpush1.msra.mxu0 0.0
  %1577 = vmatprep.subr.mxu0 0.0
  %1578 = vmatpush1.msra.mxu0 0.0
  %1579 = vmatprep.subr.mxu0 0.0
  %1580 = vmatpush1.msra.mxu0 0.0
  %1581 = vmatprep.subr.mxu0 0.0
  %1582 = vmatpush1.msra.mxu0 0.0
  %1583 = vmatprep.subr.mxu0 0.0
  %1584 = vmatpush1.msra.mxu0 0.0
  %1585 = vmatprep.subr.mxu0 0.0
  %1586 = vmatpush1.msra.mxu0 0.0
  %1587 = vmatprep.subr.mxu0 0.0
  %1588 = vmatpush1.msra.mxu0 0.0
  %1589 = vmatprep.subr.mxu0 0.0
  %1590 = vmatpush1.msra.mxu0 0.0
  %1591 = vmatprep.subr.mxu0 0.0
  %1592 = vmatpush1.msra.mxu0 0.0
  %1593 = vmatprep.subr.mxu0 0.0
  %1594 = vmatpush1.msra.mxu0 0.0
  %1595 = vmatprep.subr.mxu0 0.0
  %1596 = vmatpush1.msra.mxu0 0.0
  %1597 = vmatprep.subr.mxu0 0.0
  %1598 = vmatpush1.msra.mxu0 0.0
  %1599 = vmatprep.subr.mxu0 0.0
  %1600 = vmatpush1.msra.mxu0 0.0
  %1601 = vmatprep.subr.mxu0 0.0
  %1602 = vmatpush1.msra.mxu0 0.0
  %1603 = vmatprep.subr.mxu0 0.0
  %1604 = vmatpush1.msra.mxu0 0.0
  %1605 = vmatprep.subr.mxu0 0.0
  %1606 = vmatpush1.msra.mxu0 0.0
  %1607 = vmatprep.mubr.f32.mxu0 0.0
  %1608 = vmatmul.mubr.f32.gmra.mrb[0].mxu0 %v1520
  %v1609 = vpop.f32.mrb[0].mxu0
  %v1610 = vadd.f32 0.0, %v1609
  %v1611 = vpop.f32.mrb[0].mxu0
  %1612 = vmatprep.mubr.f32.mxu0 0.0
  %1613 = vmatmul.mubr.f32.gmra.mrb[0].mxu0 %v1523
  %v1614 = vpop.f32.mrb[0].mxu0
  %v1615 = vadd.f32 0.0, %v1614
  %v1616 = vpop.f32.mrb[0].mxu0
  %1617 = vmatprep.mubr.f32.mxu0 0.0
  %1618 = vmatmul.mubr.f32.gmra.mrb[0].mxu0 %v1526
  %v1619 = vpop.f32.mrb[0].mxu0
  %v1620 = vadd.f32 0.0, %v1619
  %v1621 = vpop.f32.mrb[0].mxu0
  %1622 = vmatprep.mubr.f32.mxu0 0.0
  %1623 = vmatmul.mubr.f32.gmra.mrb[0].mxu0 %v1529
  %v1624 = vpop.f32.mrb[0].mxu0
  %v1625 = vadd.f32 0.0, %v1624
  %v1626 = vpop.f32.mrb[0].mxu0
  %1627 = vmatprep.mubr.f32.mxu0 0.0
  %1628 = vmatmul.mubr.f32.gmra.mrb[0].mxu0 %v1532
  %v1629 = vpop.f32.mrb[0].mxu0
  %v1630 = vadd.f32 0.0, %v1629
  %v1631 = vpop.f32.mrb[0].mxu0
  %1632 = vmatprep.mubr.f32.mxu0 0.0
  %1633 = vmatmul.mubr.f32.gmra.mrb[0].mxu0 %v1535
  %v1634 = vpop.f32.mrb[0].mxu0
  %v1635 = vadd.f32 0.0, %v1634
  %v1636 = vpop.f32.mrb[0].mxu0
  %1637 = vmatprep.mubr.f32.mxu0 0.0
  %1638 = vmatmul.mubr.f32.gmra.mrb[0].mxu0 %v1538
  %v1639 = vpop.f32.mrb[0].mxu0
  %v1640 = vadd.f32 0.0, %v1639
  %v1641 = vpop.f32.mrb[0].mxu0
  %1642 = vmatprep.mubr.f32.mxu0 0.0
  %1643 = vmatmul.mubr.f32.gmra.mrb[0].mxu0 %v1541
  %v1644 = vpop.f32.mrb[0].mxu0
  %v1645 = vadd.f32 0.0, %v1644
  %v1646 = vpop.f32.mrb[0].mxu0
  %1647 = vdwg.mxu0
  %v1648 = vld [vmem:[%s6] sm:$0xff]
  %v1649 = vld [vmem:[%s6 + $0x8] sm:$0xff]
  %v1650 = vld [vmem:[%s6 + $0x10] sm:$0xff]
  %v1651 = vld [vmem:[%s6 + $0x18] sm:$0xff]
  %v1652 = vld [vmem:[%s6 + $0x20] sm:$0xff]
  %v1653 = vld [vmem:[%s6 + $0x28] sm:$0xff]
  %v1654 = vld [vmem:[%s6 + $0x30] sm:$0xff]
  %v1655 = vld [vmem:[%s6 + $0x38] sm:$0xff]
  %v1656 = vld [vmem:[%s6 + $0x40] sm:$0xff]
  %v1657 = vld [vmem:[%s6 + $0x48] sm:$0xff]
  %v1658 = vld [vmem:[%s6 + $0x50] sm:$0xff]
  %v1659 = vld [vmem:[%s6 + $0x58] sm:$0xff]
  %s1660 = scalar_lea.vmem %s7, 32
  %v1661 = vld [vmem:[%s1660] sm:$0xff]
  %v1662 = vld [vmem:[%s1660 + $0x8] sm:$0xff]
  %v1663 = vld [vmem:[%s1660 + $0x10] sm:$0xff]
  %v1664 = vld [vmem:[%s1660 + $0x18] sm:$0xff]
  %1665 = vmatprep.subr.mxu0 0.0
  %1666 = vmatpush1.msra.mxu0 %v1661
  %1667 = vmatprep.subr.mxu0 0.0
  %1668 = vmatpush1.msra.mxu0 %v1662
  %1669 = vmatprep.subr.mxu0 0.0
  %1670 = vmatpush1.msra.mxu0 %v1663
  %1671 = vmatprep.subr.mxu0 0.0
  %1672 = vmatpush1.msra.mxu0 %v1664
  %1673 = vmatprep.subr.mxu0 0.0
  %1674 = vmatpush1.msra.mxu0 0.0
  %1675 = vmatprep.subr.mxu0 0.0
  %1676 = vmatpush1.msra.mxu0 0.0
  %1677 = vmatprep.subr.mxu0 0.0
  %1678 = vmatpush1.msra.mxu0 0.0
  %1679 = vmatprep.subr.mxu0 0.0
  %1680 = vmatpush1.msra.mxu0 0.0
  %1681 = vmatprep.subr.mxu0 0.0
  %1682 = vmatpush1.msra.mxu0 0.0
  %1683 = vmatprep.subr.mxu0 0.0
  %1684 = vmatpush1.msra.mxu0 0.0
  %1685 = vmatprep.subr.mxu0 0.0
  %1686 = vmatpush1.msra.mxu0 0.0
  %1687 = vmatprep.subr.mxu0 0.0
  %1688 = vmatpush1.msra.mxu0 0.0
  %1689 = vmatprep.subr.mxu0 0.0
  %1690 = vmatpush1.msra.mxu0 0.0
  %1691 = vmatprep.subr.mxu0 0.0
  %1692 = vmatpush1.msra.mxu0 0.0
  %1693 = vmatprep.subr.mxu0 0.0
  %1694 = vmatpush1.msra.mxu0 0.0
  %1695 = vmatprep.subr.mxu0 0.0
  %1696 = vmatpush1.msra.mxu0 0.0
  %1697 = vmatprep.subr.mxu0 0.0
  %1698 = vmatpush1.msra.mxu0 0.0
  %1699 = vmatprep.subr.mxu0 0.0
  %1700 = vmatpush1.msra.mxu0 0.0
  %1701 = vmatprep.subr.mxu0 0.0
  %1702 = vmatpush1.msra.mxu0 0.0
  %1703 = vmatprep.subr.mxu0 0.0
  %1704 = vmatpush1.msra.mxu0 0.0
  %1705 = vmatprep.subr.mxu0 0.0
  %1706 = vmatpush1.msra.mxu0 0.0
  %1707 = vmatprep.subr.mxu0 0.0
  %1708 = vmatpush1.msra.mxu0 0.0
  %1709 = vmatprep.subr.mxu0 0.0
  %1710 = vmatpush1.msra.mxu0 0.0
  %1711 = vmatprep.subr.mxu0 0.0
  %1712 = vmatpush1.msra.mxu0 0.0
  %1713 = vmatprep.subr.mxu0 0.0
  %1714 = vmatpush1.msra.mxu0 0.0
  %1715 = vmatprep.subr.mxu0 0.0
  %1716 = vmatpush1.msra.mxu0 0.0
  %1717 = vmatprep.subr.mxu0 0.0
  %1718 = vmatpush1.msra.mxu0 0.0
  %1719 = vmatprep.subr.mxu0 0.0
  %1720 = vmatpush1.msra.mxu0 0.0
  %1721 = vmatprep.subr.mxu0 0.0
  %1722 = vmatpush1.msra.mxu0 0.0
  %1723 = vmatprep.subr.mxu0 0.0
  %1724 = vmatpush1.msra.mxu0 0.0
  %1725 = vmatprep.subr.mxu0 0.0
  %1726 = vmatpush1.msra.mxu0 0.0
  %1727 = vmatprep.subr.mxu0 0.0
  %1728 = vmatpush1.msra.mxu0 0.0
  %1729 = vmatprep.mubr.f32.mxu0 0.0
  %1730 = vmatmul.mubr.f32.gmra.mrb[0].mxu0 %v1520
  %v1731 = vpop.f32.mrb[0].mxu0
  %v1732 = vadd.f32 0.0, %v1731
  %v1733 = vpop.f32.mrb[0].mxu0
  %1734 = vmatprep.mubr.f32.mxu0 0.0
  %1735 = vmatmul.mubr.f32.gmra.mrb[0].mxu0 %v1523
  %v1736 = vpop.f32.mrb[0].mxu0
  %v1737 = vadd.f32 0.0, %v1736
  %v1738 = vpop.f32.mrb[0].mxu0
  %1739 = vmatprep.mubr.f32.mxu0 0.0
  %1740 = vmatmul.mubr.f32.gmra.mrb[0].mxu0 %v1526
  %v1741 = vpop.f32.mrb[0].mxu0
  %v1742 = vadd.f32 0.0, %v1741
  %v1743 = vpop.f32.mrb[0].mxu0
  %1744 = vmatprep.mubr.f32.mxu0 0.0
  %1745 = vmatmul.mubr.f32.gmra.mrb[0].mxu0 %v1529
  %v1746 = vpop.f32.mrb[0].mxu0
  %v1747 = vadd.f32 0.0, %v1746
  %v1748 = vpop.f32.mrb[0].mxu0
  %1749 = vmatprep.mubr.f32.mxu0 0.0
  %1750 = vmatmul.mubr.f32.gmra.mrb[0].mxu0 %v1532
  %v1751 = vpop.f32.mrb[0].mxu0
  %v1752 = vadd.f32 0.0, %v1751
  %v1753 = vpop.f32.mrb[0].mxu0
  %1754 = vmatprep.mubr.f32.mxu0 0.0
  %1755 = vmatmul.mubr.f32.gmra.mrb[0].mxu0 %v1535
  %v1756 = vpop.f32.mrb[0].mxu0
  %v1757 = vadd.f32 0.0, %v1756
  %v1758 = vpop.f32.mrb[0].mxu0
  %1759 = vmatprep.mubr.f32.mxu0 0.0
  %1760 = vmatmul.mubr.f32.gmra.mrb[0].mxu0 %v1538
  %v1761 = vpop.f32.mrb[0].mxu0
  %v1762 = vadd.f32 0.0, %v1761
  %v1763 = vpop.f32.mrb[0].mxu0
  %1764 = vmatprep.mubr.f32.mxu0 0.0
  %1765 = vmatmul.mubr.f32.gmra.mrb[0].mxu0 %v1541
  %v1766 = vpop.f32.mrb[0].mxu0
  %v1767 = vadd.f32 0.0, %v1766
  %v1768 = vpop.f32.mrb[0].mxu0
  %1769 = vdwg.mxu0
  %s1770 = scalar_lea.vmem %s6, 96
  %v1771 = vld [vmem:[%s1770] sm:$0xff]
  %v1772 = vld [vmem:[%s1770 + $0x8] sm:$0xff]
  %v1773 = vld [vmem:[%s1770 + $0x10] sm:$0xff]
  %v1774 = vld [vmem:[%s1770 + $0x18] sm:$0xff]
  %v1775 = vld [vmem:[%s1770 + $0x20] sm:$0xff]
  %v1776 = vld [vmem:[%s1770 + $0x28] sm:$0xff]
  %v1777 = vld [vmem:[%s1770 + $0x30] sm:$0xff]
  %v1778 = vld [vmem:[%s1770 + $0x38] sm:$0xff]
  %v1779 = vld [vmem:[%s1770 + $0x40] sm:$0xff]
  %v1780 = vld [vmem:[%s1770 + $0x48] sm:$0xff]
  %v1781 = vld [vmem:[%s1770 + $0x50] sm:$0xff]
  %v1782 = vld [vmem:[%s1770 + $0x58] sm:$0xff]
  %v1784 = vsel %vm297, %v1771, 0
  %v1787 = vsel %vm297, %v1772, 0
  %v1790 = vsel %vm297, %v1773, 0
  %v1793 = vsel %vm297, %v1774, 0
  %v1796 = vsel %vm297, %v1775, 0
  %v1799 = vsel %vm297, %v1776, 0
  %v1802 = vsel %vm297, %v1777, 0
  %v1805 = vsel %vm297, %v1778, 0
  %v1808 = vsel %vm297, %v1779, 0
  %v1811 = vsel %vm297, %v1780, 0
  %v1814 = vsel %vm297, %v1781, 0
  %v1817 = vsel %vm297, %v1782, 0
  %1819 = vmatprep.subr.mxu0 0.0
  %1820 = vmatpush1.msra.mxu0 %v1732
  %1821 = vmatprep.subr.mxu0 0.0
  %1822 = vmatpush1.msra.mxu0 %v1737
  %1823 = vmatprep.subr.mxu0 0.0
  %1824 = vmatpush1.msra.mxu0 %v1742
  %1825 = vmatprep.subr.mxu0 0.0
  %1826 = vmatpush1.msra.mxu0 %v1747
  %1827 = vmatprep.subr.mxu0 0.0
  %1828 = vmatpush1.msra.mxu0 %v1752
  %1829 = vmatprep.subr.mxu0 0.0
  %1830 = vmatpush1.msra.mxu0 %v1757
  %1831 = vmatprep.subr.mxu0 0.0
  %1832 = vmatpush1.msra.mxu0 %v1762
  %1833 = vmatprep.subr.mxu0 0.0
  %1834 = vmatpush1.msra.mxu0 %v1767
  %1835 = vmatprep.subr.mxu0 0.0
  %1836 = vmatpush1.msra.mxu0 0.0
  %1837 = vmatprep.subr.mxu0 0.0
  %1838 = vmatpush1.msra.mxu0 0.0
  %1839 = vmatprep.subr.mxu0 0.0
  %1840 = vmatpush1.msra.mxu0 0.0
  %1841 = vmatprep.subr.mxu0 0.0
  %1842 = vmatpush1.msra.mxu0 0.0
  %1843 = vmatprep.subr.mxu0 0.0
  %1844 = vmatpush1.msra.mxu0 0.0
  %1845 = vmatprep.subr.mxu0 0.0
  %1846 = vmatpush1.msra.mxu0 0.0
  %1847 = vmatprep.subr.mxu0 0.0
  %1848 = vmatpush1.msra.mxu0 0.0
  %1849 = vmatprep.subr.mxu0 0.0
  %1850 = vmatpush1.msra.mxu0 0.0
  %1851 = vmatprep.subr.mxu0 0.0
  %1852 = vmatpush1.msra.mxu0 0.0
  %1853 = vmatprep.subr.mxu0 0.0
  %1854 = vmatpush1.msra.mxu0 0.0
  %1855 = vmatprep.subr.mxu0 0.0
  %1856 = vmatpush1.msra.mxu0 0.0
  %1857 = vmatprep.subr.mxu0 0.0
  %1858 = vmatpush1.msra.mxu0 0.0
  %1859 = vmatprep.subr.mxu0 0.0
  %1860 = vmatpush1.msra.mxu0 0.0
  %1861 = vmatprep.subr.mxu0 0.0
  %1862 = vmatpush1.msra.mxu0 0.0
  %1863 = vmatprep.subr.mxu0 0.0
  %1864 = vmatpush1.msra.mxu0 0.0
  %1865 = vmatprep.subr.mxu0 0.0
  %1866 = vmatpush1.msra.mxu0 0.0
  %1867 = vmatprep.subr.mxu0 0.0
  %1868 = vmatpush1.msra.mxu0 0.0
  %1869 = vmatprep.subr.mxu0 0.0
  %1870 = vmatpush1.msra.mxu0 0.0
  %1871 = vmatprep.subr.mxu0 0.0
  %1872 = vmatpush1.msra.mxu0 0.0
  %1873 = vmatprep.subr.mxu0 0.0
  %1874 = vmatpush1.msra.mxu0 0.0
  %1875 = vmatprep.subr.mxu0 0.0
  %1876 = vmatpush1.msra.mxu0 0.0
  %1877 = vmatprep.subr.mxu0 0.0
  %1878 = vmatpush1.msra.mxu0 0.0
  %1879 = vmatprep.subr.mxu0 0.0
  %1880 = vmatpush1.msra.mxu0 0.0
  %1881 = vmatprep.subr.mxu0 0.0
  %1882 = vmatpush1.msra.mxu0 0.0
  %1883 = vmatprep.mubr.f32.mxu0 0.0
  %1884 = vmatmul.mubr.f32.gmra.mrb[0].mxu0 %v1784
  %v1885 = vpop.f32.mrb[0].mxu0
  %v1886 = vadd.f32 0.0, %v1885
  %v1887 = vpop.f32.mrb[0].mxu0
  %1888 = vmatprep.mubr.f32.mxu0 0.0
  %1889 = vmatmul.mubr.f32.gmra.mrb[0].mxu0 %v1787
  %v1890 = vpop.f32.mrb[0].mxu0
  %v1891 = vadd.f32 0.0, %v1890
  %v1892 = vpop.f32.mrb[0].mxu0
  %1893 = vmatprep.mubr.f32.mxu0 0.0
  %1894 = vmatmul.mubr.f32.gmra.mrb[0].mxu0 %v1790
  %v1895 = vpop.f32.mrb[0].mxu0
  %v1896 = vadd.f32 0.0, %v1895
  %v1897 = vpop.f32.mrb[0].mxu0
  %1898 = vmatprep.mubr.f32.mxu0 0.0
  %1899 = vmatmul.mubr.f32.gmra.mrb[0].mxu0 %v1793
  %v1900 = vpop.f32.mrb[0].mxu0
  %v1901 = vadd.f32 0.0, %v1900
  %v1902 = vpop.f32.mrb[0].mxu0
  %1903 = vmatprep.mubr.f32.mxu0 0.0
  %1904 = vmatmul.mubr.f32.gmra.mrb[0].mxu0 %v1796
  %v1905 = vpop.f32.mrb[0].mxu0
  %v1906 = vadd.f32 0.0, %v1905
  %v1907 = vpop.f32.mrb[0].mxu0
  %1908 = vmatprep.mubr.f32.mxu0 0.0
  %1909 = vmatmul.mubr.f32.gmra.mrb[0].mxu0 %v1799
  %v1910 = vpop.f32.mrb[0].mxu0
  %v1911 = vadd.f32 0.0, %v1910
  %v1912 = vpop.f32.mrb[0].mxu0
  %1913 = vmatprep.mubr.f32.mxu0 0.0
  %1914 = vmatmul.mubr.f32.gmra.mrb[0].mxu0 %v1802
  %v1915 = vpop.f32.mrb[0].mxu0
  %v1916 = vadd.f32 0.0, %v1915
  %v1917 = vpop.f32.mrb[0].mxu0
  %1918 = vmatprep.mubr.f32.mxu0 0.0
  %1919 = vmatmul.mubr.f32.gmra.mrb[0].mxu0 %v1805
  %v1920 = vpop.f32.mrb[0].mxu0
  %v1921 = vadd.f32 0.0, %v1920
  %v1922 = vpop.f32.mrb[0].mxu0
  %1923 = vmatprep.mubr.f32.mxu0 0.0
  %1924 = vmatmul.mubr.f32.gmra.mrb[0].mxu0 %v1808
  %v1925 = vpop.f32.mrb[0].mxu0
  %v1926 = vadd.f32 0.0, %v1925
  %v1927 = vpop.f32.mrb[0].mxu0
  %1928 = vmatprep.mubr.f32.mxu0 0.0
  %1929 = vmatmul.mubr.f32.gmra.mrb[0].mxu0 %v1811
  %v1930 = vpop.f32.mrb[0].mxu0
  %v1931 = vadd.f32 0.0, %v1930
  %v1932 = vpop.f32.mrb[0].mxu0
  %1933 = vmatprep.mubr.f32.mxu0 0.0
  %1934 = vmatmul.mubr.f32.gmra.mrb[0].mxu0 %v1814
  %v1935 = vpop.f32.mrb[0].mxu0
  %v1936 = vadd.f32 0.0, %v1935
  %v1937 = vpop.f32.mrb[0].mxu0
  %1938 = vmatprep.mubr.f32.mxu0 0.0
  %1939 = vmatmul.mubr.f32.gmra.mrb[0].mxu0 %v1817
  %v1940 = vpop.f32.mrb[0].mxu0
  %v1941 = vadd.f32 0.0, %v1940
  %v1942 = vpop.f32.mrb[0].mxu0
  %1943 = vdwg.mxu0
  %v1945 = vsel %vm297, %v1648, 0
  %v1948 = vsel %vm297, %v1649, 0
  %v1951 = vsel %vm297, %v1650, 0
  %v1954 = vsel %vm297, %v1651, 0
  %v1957 = vsel %vm297, %v1652, 0
  %v1960 = vsel %vm297, %v1653, 0
  %v1963 = vsel %vm297, %v1654, 0
  %v1966 = vsel %vm297, %v1655, 0
  %v1969 = vsel %vm297, %v1656, 0
  %v1972 = vsel %vm297, %v1657, 0
  %v1975 = vsel %vm297, %v1658, 0
  %v1978 = vsel %vm297, %v1659, 0
  %1980 = vmatprep.subr.mxu0 0.0
  %1981 = vmatpush1.msra.mxu0 %v1610
  %1982 = vmatprep.subr.mxu0 0.0
  %1983 = vmatpush1.msra.mxu0 %v1615
  %1984 = vmatprep.subr.mxu0 0.0
  %1985 = vmatpush1.msra.mxu0 %v1620
  %1986 = vmatprep.subr.mxu0 0.0
  %1987 = vmatpush1.msra.mxu0 %v1625
  %1988 = vmatprep.subr.mxu0 0.0
  %1989 = vmatpush1.msra.mxu0 %v1630
  %1990 = vmatprep.subr.mxu0 0.0
  %1991 = vmatpush1.msra.mxu0 %v1635
  %1992 = vmatprep.subr.mxu0 0.0
  %1993 = vmatpush1.msra.mxu0 %v1640
  %1994 = vmatprep.subr.mxu0 0.0
  %1995 = vmatpush1.msra.mxu0 %v1645
  %1996 = vmatprep.subr.mxu0 0.0
  %1997 = vmatpush1.msra.mxu0 0.0
  %1998 = vmatprep.subr.mxu0 0.0
  %1999 = vmatpush1.msra.mxu0 0.0
  %2000 = vmatprep.subr.mxu0 0.0
  %2001 = vmatpush1.msra.mxu0 0.0
  %2002 = vmatprep.subr.mxu0 0.0
  %2003 = vmatpush1.msra.mxu0 0.0
  %2004 = vmatprep.subr.mxu0 0.0
  %2005 = vmatpush1.msra.mxu0 0.0
  %2006 = vmatprep.subr.mxu0 0.0
  %2007 = vmatpush1.msra.mxu0 0.0
  %2008 = vmatprep.subr.mxu0 0.0
  %2009 = vmatpush1.msra.mxu0 0.0
  %2010 = vmatprep.subr.mxu0 0.0
  %2011 = vmatpush1.msra.mxu0 0.0
  %2012 = vmatprep.subr.mxu0 0.0
  %2013 = vmatpush1.msra.mxu0 0.0
  %2014 = vmatprep.subr.mxu0 0.0
  %2015 = vmatpush1.msra.mxu0 0.0
  %2016 = vmatprep.subr.mxu0 0.0
  %2017 = vmatpush1.msra.mxu0 0.0
  %2018 = vmatprep.subr.mxu0 0.0
  %2019 = vmatpush1.msra.mxu0 0.0
  %2020 = vmatprep.subr.mxu0 0.0
  %2021 = vmatpush1.msra.mxu0 0.0
  %2022 = vmatprep.subr.mxu0 0.0
  %2023 = vmatpush1.msra.mxu0 0.0
  %2024 = vmatprep.subr.mxu0 0.0
  %2025 = vmatpush1.msra.mxu0 0.0
  %2026 = vmatprep.subr.mxu0 0.0
  %2027 = vmatpush1.msra.mxu0 0.0
  %2028 = vmatprep.subr.mxu0 0.0
  %2029 = vmatpush1.msra.mxu0 0.0
  %2030 = vmatprep.subr.mxu0 0.0
  %2031 = vmatpush1.msra.mxu0 0.0
  %2032 = vmatprep.subr.mxu0 0.0
  %2033 = vmatpush1.msra.mxu0 0.0
  %2034 = vmatprep.subr.mxu0 0.0
  %2035 = vmatpush1.msra.mxu0 0.0
  %2036 = vmatprep.subr.mxu0 0.0
  %2037 = vmatpush1.msra.mxu0 0.0
  %2038 = vmatprep.subr.mxu0 0.0
  %2039 = vmatpush1.msra.mxu0 0.0
  %2040 = vmatprep.subr.mxu0 0.0
  %2041 = vmatpush1.msra.mxu0 0.0
  %2042 = vmatprep.subr.mxu0 0.0
  %2043 = vmatpush1.msra.mxu0 0.0
  %2044 = vmatprep.mubr.f32.mxu0 0.0
  %2045 = vmatmul.mubr.f32.gmra.mrb[0].mxu0 %v1945
  %v2046 = vpop.f32.mrb[0].mxu0
  %v2047 = vadd.f32 %v1886, %v2046
  %v2048 = vpop.f32.mrb[0].mxu0
  %2049 = vmatprep.mubr.f32.mxu0 0.0
  %2050 = vmatmul.mubr.f32.gmra.mrb[0].mxu0 %v1948
  %v2051 = vpop.f32.mrb[0].mxu0
  %v2052 = vadd.f32 %v1891, %v2051
  %v2053 = vpop.f32.mrb[0].mxu0
  %2054 = vmatprep.mubr.f32.mxu0 0.0
  %2055 = vmatmul.mubr.f32.gmra.mrb[0].mxu0 %v1951
  %v2056 = vpop.f32.mrb[0].mxu0
  %v2057 = vadd.f32 %v1896, %v2056
  %v2058 = vpop.f32.mrb[0].mxu0
  %2059 = vmatprep.mubr.f32.mxu0 0.0
  %2060 = vmatmul.mubr.f32.gmra.mrb[0].mxu0 %v1954
  %v2061 = vpop.f32.mrb[0].mxu0
  %v2062 = vadd.f32 %v1901, %v2061
  %v2063 = vpop.f32.mrb[0].mxu0
  %2064 = vmatprep.mubr.f32.mxu0 0.0
  %2065 = vmatmul.mubr.f32.gmra.mrb[0].mxu0 %v1957
  %v2066 = vpop.f32.mrb[0].mxu0
  %v2067 = vadd.f32 %v1906, %v2066
  %v2068 = vpop.f32.mrb[0].mxu0
  %2069 = vmatprep.mubr.f32.mxu0 0.0
  %2070 = vmatmul.mubr.f32.gmra.mrb[0].mxu0 %v1960
  %v2071 = vpop.f32.mrb[0].mxu0
  %v2072 = vadd.f32 %v1911, %v2071
  %v2073 = vpop.f32.mrb[0].mxu0
  %2074 = vmatprep.mubr.f32.mxu0 0.0
  %2075 = vmatmul.mubr.f32.gmra.mrb[0].mxu0 %v1963
  %v2076 = vpop.f32.mrb[0].mxu0
  %v2077 = vadd.f32 %v1916, %v2076
  %v2078 = vpop.f32.mrb[0].mxu0
  %2079 = vmatprep.mubr.f32.mxu0 0.0
  %2080 = vmatmul.mubr.f32.gmra.mrb[0].mxu0 %v1966
  %v2081 = vpop.f32.mrb[0].mxu0
  %v2082 = vadd.f32 %v1921, %v2081
  %v2083 = vpop.f32.mrb[0].mxu0
  %2084 = vmatprep.mubr.f32.mxu0 0.0
  %2085 = vmatmul.mubr.f32.gmra.mrb[0].mxu0 %v1969
  %v2086 = vpop.f32.mrb[0].mxu0
  %v2087 = vadd.f32 %v1926, %v2086
  %v2088 = vpop.f32.mrb[0].mxu0
  %2089 = vmatprep.mubr.f32.mxu0 0.0
  %2090 = vmatmul.mubr.f32.gmra.mrb[0].mxu0 %v1972
  %v2091 = vpop.f32.mrb[0].mxu0
  %v2092 = vadd.f32 %v1931, %v2091
  %v2093 = vpop.f32.mrb[0].mxu0
  %2094 = vmatprep.mubr.f32.mxu0 0.0
  %2095 = vmatmul.mubr.f32.gmra.mrb[0].mxu0 %v1975
  %v2096 = vpop.f32.mrb[0].mxu0
  %v2097 = vadd.f32 %v1936, %v2096
  %v2098 = vpop.f32.mrb[0].mxu0
  %2099 = vmatprep.mubr.f32.mxu0 0.0
  %2100 = vmatmul.mubr.f32.gmra.mrb[0].mxu0 %v1978
  %v2101 = vpop.f32.mrb[0].mxu0
  %v2102 = vadd.f32 %v1941, %v2101
  %v2103 = vpop.f32.mrb[0].mxu0
  %2104 = vdwg.mxu0
  %s2105 = scalar_lea.vmem %s7, 64
  %v2106 = vld [vmem:[%s2105] sm:$0xff]
  %v2107 = vld [vmem:[%s2105 + $0x8] sm:$0xff]
  %v2108 = vld [vmem:[%s2105 + $0x10] sm:$0xff]
  %v2109 = vld [vmem:[%s2105 + $0x18] sm:$0xff]
  %2110 = vmatprep.subr.mxu0 0.0
  %2111 = vmatpush1.msra.mxu0 %v2106
  %2112 = vmatprep.subr.mxu0 0.0
  %2113 = vmatpush1.msra.mxu0 %v2107
  %2114 = vmatprep.subr.mxu0 0.0
  %2115 = vmatpush1.msra.mxu0 %v2108
  %2116 = vmatprep.subr.mxu0 0.0
  %2117 = vmatpush1.msra.mxu0 %v2109
  %2118 = vmatprep.subr.mxu0 0.0
  %2119 = vmatpush1.msra.mxu0 0.0
  %2120 = vmatprep.subr.mxu0 0.0
  %2121 = vmatpush1.msra.mxu0 0.0
  %2122 = vmatprep.subr.mxu0 0.0
  %2123 = vmatpush1.msra.mxu0 0.0
  %2124 = vmatprep.subr.mxu0 0.0
  %2125 = vmatpush1.msra.mxu0 0.0
  %2126 = vmatprep.subr.mxu0 0.0
  %2127 = vmatpush1.msra.mxu0 0.0
  %2128 = vmatprep.subr.mxu0 0.0
  %2129 = vmatpush1.msra.mxu0 0.0
  %2130 = vmatprep.subr.mxu0 0.0
  %2131 = vmatpush1.msra.mxu0 0.0
  %2132 = vmatprep.subr.mxu0 0.0
  %2133 = vmatpush1.msra.mxu0 0.0
  %2134 = vmatprep.subr.mxu0 0.0
  %2135 = vmatpush1.msra.mxu0 0.0
  %2136 = vmatprep.subr.mxu0 0.0
  %2137 = vmatpush1.msra.mxu0 0.0
  %2138 = vmatprep.subr.mxu0 0.0
  %2139 = vmatpush1.msra.mxu0 0.0
  %2140 = vmatprep.subr.mxu0 0.0
  %2141 = vmatpush1.msra.mxu0 0.0
  %2142 = vmatprep.subr.mxu0 0.0
  %2143 = vmatpush1.msra.mxu0 0.0
  %2144 = vmatprep.subr.mxu0 0.0
  %2145 = vmatpush1.msra.mxu0 0.0
  %2146 = vmatprep.subr.mxu0 0.0
  %2147 = vmatpush1.msra.mxu0 0.0
  %2148 = vmatprep.subr.mxu0 0.0
  %2149 = vmatpush1.msra.mxu0 0.0
  %2150 = vmatprep.subr.mxu0 0.0
  %2151 = vmatpush1.msra.mxu0 0.0
  %2152 = vmatprep.subr.mxu0 0.0
  %2153 = vmatpush1.msra.mxu0 0.0
  %2154 = vmatprep.subr.mxu0 0.0
  %2155 = vmatpush1.msra.mxu0 0.0
  %2156 = vmatprep.subr.mxu0 0.0
  %2157 = vmatpush1.msra.mxu0 0.0
  %2158 = vmatprep.subr.mxu0 0.0
  %2159 = vmatpush1.msra.mxu0 0.0
  %2160 = vmatprep.subr.mxu0 0.0
  %2161 = vmatpush1.msra.mxu0 0.0
  %2162 = vmatprep.subr.mxu0 0.0
  %2163 = vmatpush1.msra.mxu0 0.0
  %2164 = vmatprep.subr.mxu0 0.0
  %2165 = vmatpush1.msra.mxu0 0.0
  %2166 = vmatprep.subr.mxu0 0.0
  %2167 = vmatpush1.msra.mxu0 0.0
  %2168 = vmatprep.subr.mxu0 0.0
  %2169 = vmatpush1.msra.mxu0 0.0
  %2170 = vmatprep.subr.mxu0 0.0
  %2171 = vmatpush1.msra.mxu0 0.0
  %2172 = vmatprep.subr.mxu0 0.0
  %2173 = vmatpush1.msra.mxu0 0.0
  %2174 = vmatprep.mubr.f32.mxu0 0.0
  %2175 = vmatmul.mubr.f32.gmra.mrb[0].mxu0 %v1520
  %v2176 = vpop.f32.mrb[0].mxu0
  %v2177 = vadd.f32 0.0, %v2176
  %v2178 = vpop.f32.mrb[0].mxu0
  %2179 = vmatprep.mubr.f32.mxu0 0.0
  %2180 = vmatmul.mubr.f32.gmra.mrb[0].mxu0 %v1523
  %v2181 = vpop.f32.mrb[0].mxu0
  %v2182 = vadd.f32 0.0, %v2181
  %v2183 = vpop.f32.mrb[0].mxu0
  %2184 = vmatprep.mubr.f32.mxu0 0.0
  %2185 = vmatmul.mubr.f32.gmra.mrb[0].mxu0 %v1526
  %v2186 = vpop.f32.mrb[0].mxu0
  %v2187 = vadd.f32 0.0, %v2186
  %v2188 = vpop.f32.mrb[0].mxu0
  %2189 = vmatprep.mubr.f32.mxu0 0.0
  %2190 = vmatmul.mubr.f32.gmra.mrb[0].mxu0 %v1529
  %v2191 = vpop.f32.mrb[0].mxu0
  %v2192 = vadd.f32 0.0, %v2191
  %v2193 = vpop.f32.mrb[0].mxu0
  %2194 = vmatprep.mubr.f32.mxu0 0.0
  %2195 = vmatmul.mubr.f32.gmra.mrb[0].mxu0 %v1532
  %v2196 = vpop.f32.mrb[0].mxu0
  %v2197 = vadd.f32 0.0, %v2196
  %v2198 = vpop.f32.mrb[0].mxu0
  %2199 = vmatprep.mubr.f32.mxu0 0.0
  %2200 = vmatmul.mubr.f32.gmra.mrb[0].mxu0 %v1535
  %v2201 = vpop.f32.mrb[0].mxu0
  %v2202 = vadd.f32 0.0, %v2201
  %v2203 = vpop.f32.mrb[0].mxu0
  %2204 = vmatprep.mubr.f32.mxu0 0.0
  %2205 = vmatmul.mubr.f32.gmra.mrb[0].mxu0 %v1538
  %v2206 = vpop.f32.mrb[0].mxu0
  %v2207 = vadd.f32 0.0, %v2206
  %v2208 = vpop.f32.mrb[0].mxu0
  %2209 = vmatprep.mubr.f32.mxu0 0.0
  %2210 = vmatmul.mubr.f32.gmra.mrb[0].mxu0 %v1541
  %v2211 = vpop.f32.mrb[0].mxu0
  %v2212 = vadd.f32 0.0, %v2211
  %v2213 = vpop.f32.mrb[0].mxu0
  %2214 = vdwg.mxu0
  %s2215 = scalar_lea.vmem %s6, 192
  %v2216 = vld [vmem:[%s2215] sm:$0xff]
  %v2217 = vld [vmem:[%s2215 + $0x8] sm:$0xff]
  %v2218 = vld [vmem:[%s2215 + $0x10] sm:$0xff]
  %v2219 = vld [vmem:[%s2215 + $0x18] sm:$0xff]
  %v2220 = vld [vmem:[%s2215 + $0x20] sm:$0xff]
  %v2221 = vld [vmem:[%s2215 + $0x28] sm:$0xff]
  %v2222 = vld [vmem:[%s2215 + $0x30] sm:$0xff]
  %v2223 = vld [vmem:[%s2215 + $0x38] sm:$0xff]
  %v2224 = vld [vmem:[%s2215 + $0x40] sm:$0xff]
  %v2225 = vld [vmem:[%s2215 + $0x48] sm:$0xff]
  %v2226 = vld [vmem:[%s2215 + $0x50] sm:$0xff]
  %v2227 = vld [vmem:[%s2215 + $0x58] sm:$0xff]
  %v2229 = vsel %vm297, %v2216, 0
  %v2232 = vsel %vm297, %v2217, 0
  %v2235 = vsel %vm297, %v2218, 0
  %v2238 = vsel %vm297, %v2219, 0
  %v2241 = vsel %vm297, %v2220, 0
  %v2244 = vsel %vm297, %v2221, 0
  %v2247 = vsel %vm297, %v2222, 0
  %v2250 = vsel %vm297, %v2223, 0
  %v2253 = vsel %vm297, %v2224, 0
  %v2256 = vsel %vm297, %v2225, 0
  %v2259 = vsel %vm297, %v2226, 0
  %v2262 = vsel %vm297, %v2227, 0
  %2264 = vmatprep.subr.mxu0 0.0
  %2265 = vmatpush1.msra.mxu0 %v2177
  %2266 = vmatprep.subr.mxu0 0.0
  %2267 = vmatpush1.msra.mxu0 %v2182
  %2268 = vmatprep.subr.mxu0 0.0
  %2269 = vmatpush1.msra.mxu0 %v2187
  %2270 = vmatprep.subr.mxu0 0.0
  %2271 = vmatpush1.msra.mxu0 %v2192
  %2272 = vmatprep.subr.mxu0 0.0
  %2273 = vmatpush1.msra.mxu0 %v2197
  %2274 = vmatprep.subr.mxu0 0.0
  %2275 = vmatpush1.msra.mxu0 %v2202
  %2276 = vmatprep.subr.mxu0 0.0
  %2277 = vmatpush1.msra.mxu0 %v2207
  %2278 = vmatprep.subr.mxu0 0.0
  %2279 = vmatpush1.msra.mxu0 %v2212
  %2280 = vmatprep.subr.mxu0 0.0
  %2281 = vmatpush1.msra.mxu0 0.0
  %2282 = vmatprep.subr.mxu0 0.0
  %2283 = vmatpush1.msra.mxu0 0.0
  %2284 = vmatprep.subr.mxu0 0.0
  %2285 = vmatpush1.msra.mxu0 0.0
  %2286 = vmatprep.subr.mxu0 0.0
  %2287 = vmatpush1.msra.mxu0 0.0
  %2288 = vmatprep.subr.mxu0 0.0
  %2289 = vmatpush1.msra.mxu0 0.0
  %2290 = vmatprep.subr.mxu0 0.0
  %2291 = vmatpush1.msra.mxu0 0.0
  %2292 = vmatprep.subr.mxu0 0.0
  %2293 = vmatpush1.msra.mxu0 0.0
  %2294 = vmatprep.subr.mxu0 0.0
  %2295 = vmatpush1.msra.mxu0 0.0
  %2296 = vmatprep.subr.mxu0 0.0
  %2297 = vmatpush1.msra.mxu0 0.0
  %2298 = vmatprep.subr.mxu0 0.0
  %2299 = vmatpush1.msra.mxu0 0.0
  %2300 = vmatprep.subr.mxu0 0.0
  %2301 = vmatpush1.msra.mxu0 0.0
  %2302 = vmatprep.subr.mxu0 0.0
  %2303 = vmatpush1.msra.mxu0 0.0
  %2304 = vmatprep.subr.mxu0 0.0
  %2305 = vmatpush1.msra.mxu0 0.0
  %2306 = vmatprep.subr.mxu0 0.0
  %2307 = vmatpush1.msra.mxu0 0.0
  %2308 = vmatprep.subr.mxu0 0.0
  %2309 = vmatpush1.msra.mxu0 0.0
  %2310 = vmatprep.subr.mxu0 0.0
  %2311 = vmatpush1.msra.mxu0 0.0
  %2312 = vmatprep.subr.mxu0 0.0
  %2313 = vmatpush1.msra.mxu0 0.0
  %2314 = vmatprep.subr.mxu0 0.0
  %2315 = vmatpush1.msra.mxu0 0.0
  %2316 = vmatprep.subr.mxu0 0.0
  %2317 = vmatpush1.msra.mxu0 0.0
  %2318 = vmatprep.subr.mxu0 0.0
  %2319 = vmatpush1.msra.mxu0 0.0
  %2320 = vmatprep.subr.mxu0 0.0
  %2321 = vmatpush1.msra.mxu0 0.0
  %2322 = vmatprep.subr.mxu0 0.0
  %2323 = vmatpush1.msra.mxu0 0.0
  %2324 = vmatprep.subr.mxu0 0.0
  %2325 = vmatpush1.msra.mxu0 0.0
  %2326 = vmatprep.subr.mxu0 0.0
  %2327 = vmatpush1.msra.mxu0 0.0
  %2328 = vmatprep.mubr.f32.mxu0 0.0
  %2329 = vmatmul.mubr.f32.gmra.mrb[0].mxu0 %v2229
  %v2330 = vpop.f32.mrb[0].mxu0
  %v2331 = vadd.f32 0.0, %v2330
  %v2332 = vpop.f32.mrb[0].mxu0
  %2333 = vmatprep.mubr.f32.mxu0 0.0
  %2334 = vmatmul.mubr.f32.gmra.mrb[0].mxu0 %v2232
  %v2335 = vpop.f32.mrb[0].mxu0
  %v2336 = vadd.f32 0.0, %v2335
  %v2337 = vpop.f32.mrb[0].mxu0
  %2338 = vmatprep.mubr.f32.mxu0 0.0
  %2339 = vmatmul.mubr.f32.gmra.mrb[0].mxu0 %v2235
  %v2340 = vpop.f32.mrb[0].mxu0
  %v2341 = vadd.f32 0.0, %v2340
  %v2342 = vpop.f32.mrb[0].mxu0
  %2343 = vmatprep.mubr.f32.mxu0 0.0
  %2344 = vmatmul.mubr.f32.gmra.mrb[0].mxu0 %v2238
  %v2345 = vpop.f32.mrb[0].mxu0
  %v2346 = vadd.f32 0.0, %v2345
  %v2347 = vpop.f32.mrb[0].mxu0
  %2348 = vmatprep.mubr.f32.mxu0 0.0
  %2349 = vmatmul.mubr.f32.gmra.mrb[0].mxu0 %v2241
  %v2350 = vpop.f32.mrb[0].mxu0
  %v2351 = vadd.f32 0.0, %v2350
  %v2352 = vpop.f32.mrb[0].mxu0
  %2353 = vmatprep.mubr.f32.mxu0 0.0
  %2354 = vmatmul.mubr.f32.gmra.mrb[0].mxu0 %v2244
  %v2355 = vpop.f32.mrb[0].mxu0
  %v2356 = vadd.f32 0.0, %v2355
  %v2357 = vpop.f32.mrb[0].mxu0
  %2358 = vmatprep.mubr.f32.mxu0 0.0
  %2359 = vmatmul.mubr.f32.gmra.mrb[0].mxu0 %v2247
  %v2360 = vpop.f32.mrb[0].mxu0
  %v2361 = vadd.f32 0.0, %v2360
  %v2362 = vpop.f32.mrb[0].mxu0
  %2363 = vmatprep.mubr.f32.mxu0 0.0
  %2364 = vmatmul.mubr.f32.gmra.mrb[0].mxu0 %v2250
  %v2365 = vpop.f32.mrb[0].mxu0
  %v2366 = vadd.f32 0.0, %v2365
  %v2367 = vpop.f32.mrb[0].mxu0
  %2368 = vmatprep.mubr.f32.mxu0 0.0
  %2369 = vmatmul.mubr.f32.gmra.mrb[0].mxu0 %v2253
  %v2370 = vpop.f32.mrb[0].mxu0
  %v2371 = vadd.f32 0.0, %v2370
  %v2372 = vpop.f32.mrb[0].mxu0
  %2373 = vmatprep.mubr.f32.mxu0 0.0
  %2374 = vmatmul.mubr.f32.gmra.mrb[0].mxu0 %v2256
  %v2375 = vpop.f32.mrb[0].mxu0
  %v2376 = vadd.f32 0.0, %v2375
  %v2377 = vpop.f32.mrb[0].mxu0
  %2378 = vmatprep.mubr.f32.mxu0 0.0
  %2379 = vmatmul.mubr.f32.gmra.mrb[0].mxu0 %v2259
  %v2380 = vpop.f32.mrb[0].mxu0
  %v2381 = vadd.f32 0.0, %v2380
  %v2382 = vpop.f32.mrb[0].mxu0
  %2383 = vmatprep.mubr.f32.mxu0 0.0
  %2384 = vmatmul.mubr.f32.gmra.mrb[0].mxu0 %v2262
  %v2385 = vpop.f32.mrb[0].mxu0
  %v2386 = vadd.f32 0.0, %v2385
  %v2387 = vpop.f32.mrb[0].mxu0
  %2388 = vdwg.mxu0
  %v2389 = vadd.f32 %v2047, %v2331
  %v2390 = vadd.f32 %v2052, %v2336
  %v2391 = vadd.f32 %v2057, %v2341
  %v2392 = vadd.f32 %v2062, %v2346
  %v2393 = vadd.f32 %v2067, %v2351
  %v2394 = vadd.f32 %v2072, %v2356
  %v2395 = vadd.f32 %v2077, %v2361
  %v2396 = vadd.f32 %v2082, %v2366
  %v2397 = vadd.f32 %v2087, %v2371
  %v2398 = vadd.f32 %v2092, %v2376
  %v2399 = vadd.f32 %v2097, %v2381
  %v2400 = vadd.f32 %v2102, %v2386
  %s2401 = scalar_lea.vmem %s7, 96
  %v2402 = vld [vmem:[%s2401] sm:$0xff]
  %v2403 = vld [vmem:[%s2401 + $0x8] sm:$0xff]
  %v2404 = vld [vmem:[%s2401 + $0x10] sm:$0xff]
  %v2405 = vld [vmem:[%s2401 + $0x18] sm:$0xff]
  %2406 = vmatprep.subr.mxu0 0.0
  %2407 = vmatpush1.msra.mxu0 %v2402
  %2408 = vmatprep.subr.mxu0 0.0
  %2409 = vmatpush1.msra.mxu0 %v2403
  %2410 = vmatprep.subr.mxu0 0.0
  %2411 = vmatpush1.msra.mxu0 %v2404
  %2412 = vmatprep.subr.mxu0 0.0
  %2413 = vmatpush1.msra.mxu0 %v2405
  %2414 = vmatprep.subr.mxu0 0.0
  %2415 = vmatpush1.msra.mxu0 0.0
  %2416 = vmatprep.subr.mxu0 0.0
  %2417 = vmatpush1.msra.mxu0 0.0
  %2418 = vmatprep.subr.mxu0 0.0
  %2419 = vmatpush1.msra.mxu0 0.0
  %2420 = vmatprep.subr.mxu0 0.0
  %2421 = vmatpush1.msra.mxu0 0.0
  %2422 = vmatprep.subr.mxu0 0.0
  %2423 = vmatpush1.msra.mxu0 0.0
  %2424 = vmatprep.subr.mxu0 0.0
  %2425 = vmatpush1.msra.mxu0 0.0
  %2426 = vmatprep.subr.mxu0 0.0
  %2427 = vmatpush1.msra.mxu0 0.0
  %2428 = vmatprep.subr.mxu0 0.0
  %2429 = vmatpush1.msra.mxu0 0.0
  %2430 = vmatprep.subr.mxu0 0.0
  %2431 = vmatpush1.msra.mxu0 0.0
  %2432 = vmatprep.subr.mxu0 0.0
  %2433 = vmatpush1.msra.mxu0 0.0
  %2434 = vmatprep.subr.mxu0 0.0
  %2435 = vmatpush1.msra.mxu0 0.0
  %2436 = vmatprep.subr.mxu0 0.0
  %2437 = vmatpush1.msra.mxu0 0.0
  %2438 = vmatprep.subr.mxu0 0.0
  %2439 = vmatpush1.msra.mxu0 0.0
  %2440 = vmatprep.subr.mxu0 0.0
  %2441 = vmatpush1.msra.mxu0 0.0
  %2442 = vmatprep.subr.mxu0 0.0
  %2443 = vmatpush1.msra.mxu0 0.0
  %2444 = vmatprep.subr.mxu0 0.0
  %2445 = vmatpush1.msra.mxu0 0.0
  %2446 = vmatprep.subr.mxu0 0.0
  %2447 = vmatpush1.msra.mxu0 0.0
  %2448 = vmatprep.subr.mxu0 0.0
  %2449 = vmatpush1.msra.mxu0 0.0
  %2450 = vmatprep.subr.mxu0 0.0
  %2451 = vmatpush1.msra.mxu0 0.0
  %2452 = vmatprep.subr.mxu0 0.0
  %2453 = vmatpush1.msra.mxu0 0.0
  %2454 = vmatprep.subr.mxu0 0.0
  %2455 = vmatpush1.msra.mxu0 0.0
  %2456 = vmatprep.subr.mxu0 0.0
  %2457 = vmatpush1.msra.mxu0 0.0
  %2458 = vmatprep.subr.mxu0 0.0
  %2459 = vmatpush1.msra.mxu0 0.0
  %2460 = vmatprep.subr.mxu0 0.0
  %2461 = vmatpush1.msra.mxu0 0.0
  %2462 = vmatprep.subr.mxu0 0.0
  %2463 = vmatpush1.msra.mxu0 0.0
  %2464 = vmatprep.subr.mxu0 0.0
  %2465 = vmatpush1.msra.mxu0 0.0
  %2466 = vmatprep.subr.mxu0 0.0
  %2467 = vmatpush1.msra.mxu0 0.0
  %2468 = vmatprep.subr.mxu0 0.0
  %2469 = vmatpush1.msra.mxu0 0.0
  %2470 = vmatprep.mubr.f32.mxu0 0.0
  %2471 = vmatmul.mubr.f32.gmra.mrb[0].mxu0 %v1520
  %v2472 = vpop.f32.mrb[0].mxu0
  %v2473 = vadd.f32 0.0, %v2472
  %v2474 = vpop.f32.mrb[0].mxu0
  %2475 = vmatprep.mubr.f32.mxu0 0.0
  %2476 = vmatmul.mubr.f32.gmra.mrb[0].mxu0 %v1523
  %v2477 = vpop.f32.mrb[0].mxu0
  %v2478 = vadd.f32 0.0, %v2477
  %v2479 = vpop.f32.mrb[0].mxu0
  %2480 = vmatprep.mubr.f32.mxu0 0.0
  %2481 = vmatmul.mubr.f32.gmra.mrb[0].mxu0 %v1526
  %v2482 = vpop.f32.mrb[0].mxu0
  %v2483 = vadd.f32 0.0, %v2482
  %v2484 = vpop.f32.mrb[0].mxu0
  %2485 = vmatprep.mubr.f32.mxu0 0.0
  %2486 = vmatmul.mubr.f32.gmra.mrb[0].mxu0 %v1529
  %v2487 = vpop.f32.mrb[0].mxu0
  %v2488 = vadd.f32 0.0, %v2487
  %v2489 = vpop.f32.mrb[0].mxu0
  %2490 = vmatprep.mubr.f32.mxu0 0.0
  %2491 = vmatmul.mubr.f32.gmra.mrb[0].mxu0 %v1532
  %v2492 = vpop.f32.mrb[0].mxu0
  %v2493 = vadd.f32 0.0, %v2492
  %v2494 = vpop.f32.mrb[0].mxu0
  %2495 = vmatprep.mubr.f32.mxu0 0.0
  %2496 = vmatmul.mubr.f32.gmra.mrb[0].mxu0 %v1535
  %v2497 = vpop.f32.mrb[0].mxu0
  %v2498 = vadd.f32 0.0, %v2497
  %v2499 = vpop.f32.mrb[0].mxu0
  %2500 = vmatprep.mubr.f32.mxu0 0.0
  %2501 = vmatmul.mubr.f32.gmra.mrb[0].mxu0 %v1538
  %v2502 = vpop.f32.mrb[0].mxu0
  %v2503 = vadd.f32 0.0, %v2502
  %v2504 = vpop.f32.mrb[0].mxu0
  %2505 = vmatprep.mubr.f32.mxu0 0.0
  %2506 = vmatmul.mubr.f32.gmra.mrb[0].mxu0 %v1541
  %v2507 = vpop.f32.mrb[0].mxu0
  %v2508 = vadd.f32 0.0, %v2507
  %v2509 = vpop.f32.mrb[0].mxu0
  %2510 = vdwg.mxu0
  %s2511 = scalar_lea.vmem %s6, 288
  %v2512 = vld [vmem:[%s2511] sm:$0xff]
  %v2513 = vld [vmem:[%s2511 + $0x8] sm:$0xff]
  %v2514 = vld [vmem:[%s2511 + $0x10] sm:$0xff]
  %v2515 = vld [vmem:[%s2511 + $0x18] sm:$0xff]
  %v2516 = vld [vmem:[%s2511 + $0x20] sm:$0xff]
  %v2517 = vld [vmem:[%s2511 + $0x28] sm:$0xff]
  %v2518 = vld [vmem:[%s2511 + $0x30] sm:$0xff]
  %v2519 = vld [vmem:[%s2511 + $0x38] sm:$0xff]
  %v2520 = vld [vmem:[%s2511 + $0x40] sm:$0xff]
  %v2521 = vld [vmem:[%s2511 + $0x48] sm:$0xff]
  %v2522 = vld [vmem:[%s2511 + $0x50] sm:$0xff]
  %v2523 = vld [vmem:[%s2511 + $0x58] sm:$0xff]
  %v2525 = vsel %vm297, %v2512, 0
  %v2528 = vsel %vm297, %v2513, 0
  %v2531 = vsel %vm297, %v2514, 0
  %v2534 = vsel %vm297, %v2515, 0
  %v2537 = vsel %vm297, %v2516, 0
  %v2540 = vsel %vm297, %v2517, 0
  %v2543 = vsel %vm297, %v2518, 0
  %v2546 = vsel %vm297, %v2519, 0
  %v2549 = vsel %vm297, %v2520, 0
  %v2552 = vsel %vm297, %v2521, 0
  %v2555 = vsel %vm297, %v2522, 0
  %v2558 = vsel %vm297, %v2523, 0
  %2560 = vmatprep.subr.mxu0 0.0
  %2561 = vmatpush1.msra.mxu0 %v2473
  %2562 = vmatprep.subr.mxu0 0.0
  %2563 = vmatpush1.msra.mxu0 %v2478
  %2564 = vmatprep.subr.mxu0 0.0
  %2565 = vmatpush1.msra.mxu0 %v2483
  %2566 = vmatprep.subr.mxu0 0.0
  %2567 = vmatpush1.msra.mxu0 %v2488
  %2568 = vmatprep.subr.mxu0 0.0
  %2569 = vmatpush1.msra.mxu0 %v2493
  %2570 = vmatprep.subr.mxu0 0.0
  %2571 = vmatpush1.msra.mxu0 %v2498
  %2572 = vmatprep.subr.mxu0 0.0
  %2573 = vmatpush1.msra.mxu0 %v2503
  %2574 = vmatprep.subr.mxu0 0.0
  %2575 = vmatpush1.msra.mxu0 %v2508
  %2576 = vmatprep.subr.mxu0 0.0
  %2577 = vmatpush1.msra.mxu0 0.0
  %2578 = vmatprep.subr.mxu0 0.0
  %2579 = vmatpush1.msra.mxu0 0.0
  %2580 = vmatprep.subr.mxu0 0.0
  %2581 = vmatpush1.msra.mxu0 0.0
  %2582 = vmatprep.subr.mxu0 0.0
  %2583 = vmatpush1.msra.mxu0 0.0
  %2584 = vmatprep.subr.mxu0 0.0
  %2585 = vmatpush1.msra.mxu0 0.0
  %2586 = vmatprep.subr.mxu0 0.0
  %2587 = vmatpush1.msra.mxu0 0.0
  %2588 = vmatprep.subr.mxu0 0.0
  %2589 = vmatpush1.msra.mxu0 0.0
  %2590 = vmatprep.subr.mxu0 0.0
  %2591 = vmatpush1.msra.mxu0 0.0
  %2592 = vmatprep.subr.mxu0 0.0
  %2593 = vmatpush1.msra.mxu0 0.0
  %2594 = vmatprep.subr.mxu0 0.0
  %2595 = vmatpush1.msra.mxu0 0.0
  %2596 = vmatprep.subr.mxu0 0.0
  %2597 = vmatpush1.msra.mxu0 0.0
  %2598 = vmatprep.subr.mxu0 0.0
  %2599 = vmatpush1.msra.mxu0 0.0
  %2600 = vmatprep.subr.mxu0 0.0
  %2601 = vmatpush1.msra.mxu0 0.0
  %2602 = vmatprep.subr.mxu0 0.0
  %2603 = vmatpush1.msra.mxu0 0.0
  %2604 = vmatprep.subr.mxu0 0.0
  %2605 = vmatpush1.msra.mxu0 0.0
  %2606 = vmatprep.subr.mxu0 0.0
  %2607 = vmatpush1.msra.mxu0 0.0
  %2608 = vmatprep.subr.mxu0 0.0
  %2609 = vmatpush1.msra.mxu0 0.0
  %2610 = vmatprep.subr.mxu0 0.0
  %2611 = vmatpush1.msra.mxu0 0.0
  %2612 = vmatprep.subr.mxu0 0.0
  %2613 = vmatpush1.msra.mxu0 0.0
  %2614 = vmatprep.subr.mxu0 0.0
  %2615 = vmatpush1.msra.mxu0 0.0
  %2616 = vmatprep.subr.mxu0 0.0
  %2617 = vmatpush1.msra.mxu0 0.0
  %2618 = vmatprep.subr.mxu0 0.0
  %2619 = vmatpush1.msra.mxu0 0.0
  %2620 = vmatprep.subr.mxu0 0.0
  %2621 = vmatpush1.msra.mxu0 0.0
  %2622 = vmatprep.subr.mxu0 0.0
  %2623 = vmatpush1.msra.mxu0 0.0
  %2624 = vmatprep.mubr.f32.mxu0 0.0
  %2625 = vmatmul.mubr.f32.gmra.mrb[0].mxu0 %v2525
  %v2626 = vpop.f32.mrb[0].mxu0
  %v2627 = vadd.f32 0.0, %v2626
  %v2628 = vpop.f32.mrb[0].mxu0
  %2629 = vmatprep.mubr.f32.mxu0 0.0
  %2630 = vmatmul.mubr.f32.gmra.mrb[0].mxu0 %v2528
  %v2631 = vpop.f32.mrb[0].mxu0
  %v2632 = vadd.f32 0.0, %v2631
  %v2633 = vpop.f32.mrb[0].mxu0
  %2634 = vmatprep.mubr.f32.mxu0 0.0
  %2635 = vmatmul.mubr.f32.gmra.mrb[0].mxu0 %v2531
  %v2636 = vpop.f32.mrb[0].mxu0
  %v2637 = vadd.f32 0.0, %v2636
  %v2638 = vpop.f32.mrb[0].mxu0
  %2639 = vmatprep.mubr.f32.mxu0 0.0
  %2640 = vmatmul.mubr.f32.gmra.mrb[0].mxu0 %v2534
  %v2641 = vpop.f32.mrb[0].mxu0
  %v2642 = vadd.f32 0.0, %v2641
  %v2643 = vpop.f32.mrb[0].mxu0
  %2644 = vmatprep.mubr.f32.mxu0 0.0
  %2645 = vmatmul.mubr.f32.gmra.mrb[0].mxu0 %v2537
  %v2646 = vpop.f32.mrb[0].mxu0
  %v2647 = vadd.f32 0.0, %v2646
  %v2648 = vpop.f32.mrb[0].mxu0
  %2649 = vmatprep.mubr.f32.mxu0 0.0
  %2650 = vmatmul.mubr.f32.gmra.mrb[0].mxu0 %v2540
  %v2651 = vpop.f32.mrb[0].mxu0
  %v2652 = vadd.f32 0.0, %v2651
  %v2653 = vpop.f32.mrb[0].mxu0
  %2654 = vmatprep.mubr.f32.mxu0 0.0
  %2655 = vmatmul.mubr.f32.gmra.mrb[0].mxu0 %v2543
  %v2656 = vpop.f32.mrb[0].mxu0
  %v2657 = vadd.f32 0.0, %v2656
  %v2658 = vpop.f32.mrb[0].mxu0
  %2659 = vmatprep.mubr.f32.mxu0 0.0
  %2660 = vmatmul.mubr.f32.gmra.mrb[0].mxu0 %v2546
  %v2661 = vpop.f32.mrb[0].mxu0
  %v2662 = vadd.f32 0.0, %v2661
  %v2663 = vpop.f32.mrb[0].mxu0
  %2664 = vmatprep.mubr.f32.mxu0 0.0
  %2665 = vmatmul.mubr.f32.gmra.mrb[0].mxu0 %v2549
  %v2666 = vpop.f32.mrb[0].mxu0
  %v2667 = vadd.f32 0.0, %v2666
  %v2668 = vpop.f32.mrb[0].mxu0
  %2669 = vmatprep.mubr.f32.mxu0 0.0
  %2670 = vmatmul.mubr.f32.gmra.mrb[0].mxu0 %v2552
  %v2671 = vpop.f32.mrb[0].mxu0
  %v2672 = vadd.f32 0.0, %v2671
  %v2673 = vpop.f32.mrb[0].mxu0
  %2674 = vmatprep.mubr.f32.mxu0 0.0
  %2675 = vmatmul.mubr.f32.gmra.mrb[0].mxu0 %v2555
  %v2676 = vpop.f32.mrb[0].mxu0
  %v2677 = vadd.f32 0.0, %v2676
  %v2678 = vpop.f32.mrb[0].mxu0
  %2679 = vmatprep.mubr.f32.mxu0 0.0
  %2680 = vmatmul.mubr.f32.gmra.mrb[0].mxu0 %v2558
  %v2681 = vpop.f32.mrb[0].mxu0
  %v2682 = vadd.f32 0.0, %v2681
  %v2683 = vpop.f32.mrb[0].mxu0
  %2684 = vdwg.mxu0
  %v2685 = vadd.f32 %v2389, %v2627
  %v2686 = vadd.f32 %v2390, %v2632
  %v2687 = vadd.f32 %v2391, %v2637
  %v2688 = vadd.f32 %v2392, %v2642
  %v2689 = vadd.f32 %v2393, %v2647
  %v2690 = vadd.f32 %v2394, %v2652
  %v2691 = vadd.f32 %v2395, %v2657
  %v2692 = vadd.f32 %v2396, %v2662
  %v2693 = vadd.f32 %v2397, %v2667
  %v2694 = vadd.f32 %v2398, %v2672
  %v2695 = vadd.f32 %v2399, %v2677
  %v2696 = vadd.f32 %v2400, %v2682
  %v2697 = vld [vmem:[%s8] sm:$0xff]
  %v2698 = vld [vmem:[%s8 + $0x8] sm:$0xff]
  %v2699 = vld [vmem:[%s8 + $0x10] sm:$0xff]
  %v2700 = vld [vmem:[%s8 + $0x18] sm:$0xff]
  %v2701 = vld [vmem:[%s8 + $0x20] sm:$0xff]
  %v2702 = vld [vmem:[%s8 + $0x28] sm:$0xff]
  %v2703 = vld [vmem:[%s8 + $0x30] sm:$0xff]
  %v2704 = vld [vmem:[%s8 + $0x38] sm:$0xff]
  %v2705 = vld [vmem:[%s8 + $0x40] sm:$0xff]
  %v2706 = vld [vmem:[%s8 + $0x48] sm:$0xff]
  %v2707 = vld [vmem:[%s8 + $0x50] sm:$0xff]
  %v2708 = vld [vmem:[%s8 + $0x58] sm:$0xff]
  %2710 = vset.pattern.permute.xlu0 0
  %2711 = vperm.xlu0 %2710, %v2697
  %v2712 = vpop.permute.xlu0 %2711
  %2715 = vset.pattern.permute.xlu0 0
  %2716 = vperm.xlu0 %2715, %v2698
  %v2717 = vpop.permute.xlu0 %2716
  %2720 = vset.pattern.permute.xlu0 0
  %2721 = vperm.xlu0 %2720, %v2699
  %v2722 = vpop.permute.xlu0 %2721
  %2725 = vset.pattern.permute.xlu0 0
  %2726 = vperm.xlu0 %2725, %v2700
  %v2727 = vpop.permute.xlu0 %2726
  %2730 = vset.pattern.permute.xlu0 0
  %2731 = vperm.xlu0 %2730, %v2701
  %v2732 = vpop.permute.xlu0 %2731
  %2735 = vset.pattern.permute.xlu0 0
  %2736 = vperm.xlu0 %2735, %v2702
  %v2737 = vpop.permute.xlu0 %2736
  %2740 = vset.pattern.permute.xlu0 0
  %2741 = vperm.xlu0 %2740, %v2703
  %v2742 = vpop.permute.xlu0 %2741
  %2745 = vset.pattern.permute.xlu0 0
  %2746 = vperm.xlu0 %2745, %v2704
  %v2747 = vpop.permute.xlu0 %2746
  %2750 = vset.pattern.permute.xlu0 0
  %2751 = vperm.xlu0 %2750, %v2705
  %v2752 = vpop.permute.xlu0 %2751
  %2755 = vset.pattern.permute.xlu0 0
  %2756 = vperm.xlu0 %2755, %v2706
  %v2757 = vpop.permute.xlu0 %2756
  %2760 = vset.pattern.permute.xlu0 0
  %2761 = vperm.xlu0 %2760, %v2707
  %v2762 = vpop.permute.xlu0 %2761
  %2765 = vset.pattern.permute.xlu0 0
  %2766 = vperm.xlu0 %2765, %v2708
  %v2767 = vpop.permute.xlu0 %2766
  %v2769 = vadd.f32 %v2685, %v2712
  %v2770 = vadd.f32 %v2686, %v2717
  %v2771 = vadd.f32 %v2687, %v2722
  %v2772 = vadd.f32 %v2688, %v2727
  %v2773 = vadd.f32 %v2689, %v2732
  %v2774 = vadd.f32 %v2690, %v2737
  %v2775 = vadd.f32 %v2691, %v2742
  %v2776 = vadd.f32 %v2692, %v2747
  %v2777 = vadd.f32 %v2693, %v2752
  %v2778 = vadd.f32 %v2694, %v2757
  %v2779 = vadd.f32 %v2695, %v2762
  %v2780 = vadd.f32 %v2696, %v2767
  %v2781 = vxor.u32 %v2769, 2147483648
  %v2782 = vxor.u32 %v2770, 2147483648
  %v2783 = vxor.u32 %v2771, 2147483648
  %v2784 = vxor.u32 %v2772, 2147483648
  %v2785 = vxor.u32 %v2773, 2147483648
  %v2786 = vxor.u32 %v2774, 2147483648
  %v2787 = vxor.u32 %v2775, 2147483648
  %v2788 = vxor.u32 %v2776, 2147483648
  %v2789 = vxor.u32 %v2777, 2147483648
  %v2790 = vxor.u32 %v2778, 2147483648
  %v2791 = vxor.u32 %v2779, 2147483648
  %v2792 = vxor.u32 %v2780, 2147483648
  %v2793 = vmul.f32 %v2781, 1.442695
  %v2794 = vpow.pop %v2793
  %v2795 = vmul.f32 %v2782, 1.442695
  %v2796 = vpow.pop %v2795
  %v2797 = vmul.f32 %v2783, 1.442695
  %v2798 = vpow.pop %v2797
  %v2799 = vmul.f32 %v2784, 1.442695
  %v2800 = vpow.pop %v2799
  %v2801 = vmul.f32 %v2785, 1.442695
  %v2802 = vpow.pop %v2801
  %v2803 = vmul.f32 %v2786, 1.442695
  %v2804 = vpow.pop %v2803
  %v2805 = vmul.f32 %v2787, 1.442695
  %v2806 = vpow.pop %v2805
  %v2807 = vmul.f32 %v2788, 1.442695
  %v2808 = vpow.pop %v2807
  %v2809 = vmul.f32 %v2789, 1.442695
  %v2810 = vpow.pop %v2809
  %v2811 = vmul.f32 %v2790, 1.442695
  %v2812 = vpow.pop %v2811
  %v2813 = vmul.f32 %v2791, 1.442695
  %v2814 = vpow.pop %v2813
  %v2815 = vmul.f32 %v2792, 1.442695
  %v2816 = vpow.pop %v2815
  %v2817 = vadd.f32 %v2794, 1.0
  %v2818 = vadd.f32 %v2796, 1.0
  %v2819 = vadd.f32 %v2798, 1.0
  %v2820 = vadd.f32 %v2800, 1.0
  %v2821 = vadd.f32 %v2802, 1.0
  %v2822 = vadd.f32 %v2804, 1.0
  %v2823 = vadd.f32 %v2806, 1.0
  %v2824 = vadd.f32 %v2808, 1.0
  %v2825 = vadd.f32 %v2810, 1.0
  %v2826 = vadd.f32 %v2812, 1.0
  %v2827 = vadd.f32 %v2814, 1.0
  %v2828 = vadd.f32 %v2816, 1.0
  %v2829 = vrcp.pop %v2817
  %v2830 = vmul.f32 1.0, %v2829
  %v2831 = vrcp.pop %v2818
  %v2832 = vmul.f32 1.0, %v2831
  %v2833 = vrcp.pop %v2819
  %v2834 = vmul.f32 1.0, %v2833
  %v2835 = vrcp.pop %v2820
  %v2836 = vmul.f32 1.0, %v2835
  %v2837 = vrcp.pop %v2821
  %v2838 = vmul.f32 1.0, %v2837
  %v2839 = vrcp.pop %v2822
  %v2840 = vmul.f32 1.0, %v2839
  %v2841 = vrcp.pop %v2823
  %v2842 = vmul.f32 1.0, %v2841
  %v2843 = vrcp.pop %v2824
  %v2844 = vmul.f32 1.0, %v2843
  %v2845 = vrcp.pop %v2825
  %v2846 = vmul.f32 1.0, %v2845
  %v2847 = vrcp.pop %v2826
  %v2848 = vmul.f32 1.0, %v2847
  %v2849 = vrcp.pop %v2827
  %v2850 = vmul.f32 1.0, %v2849
  %v2851 = vrcp.pop %v2828
  %v2852 = vmul.f32 1.0, %v2851
  %2853 = vst.msk [vmem:[%s9] sm:$0xff] %vm297, %v2830
  %2854 = vst.msk [vmem:[%s9 + $0x8] sm:$0xff] %vm297, %v2832
  %2855 = vst.msk [vmem:[%s9 + $0x10] sm:$0xff] %vm297, %v2834
  %2856 = vst.msk [vmem:[%s9 + $0x18] sm:$0xff] %vm297, %v2836
  %2857 = vst.msk [vmem:[%s9 + $0x20] sm:$0xff] %vm297, %v2838
  %2858 = vst.msk [vmem:[%s9 + $0x28] sm:$0xff] %vm297, %v2840
  %2859 = vst.msk [vmem:[%s9 + $0x30] sm:$0xff] %vm297, %v2842
  %2860 = vst.msk [vmem:[%s9 + $0x38] sm:$0xff] %vm297, %v2844
  %2861 = vst.msk [vmem:[%s9 + $0x40] sm:$0xff] %vm297, %v2846
  %2862 = vst.msk [vmem:[%s9 + $0x48] sm:$0xff] %vm297, %v2848
  %2863 = vst.msk [vmem:[%s9 + $0x50] sm:$0xff] %vm297, %v2850
  %2864 = vst.msk [vmem:[%s9 + $0x58] sm:$0xff] %vm297, %v2852
  // Predicated region
  $region38: #{forward.1} parent=0 // pred_check
    _
  $region39: #{forward.1} parent=0 // pred_check_branch
    %2866 = sbr.rel (0) target = $region41
  $region40: #{forward.1} parent=0 // pred_region
    _
  $region41: #{forward.1} parent=0 // pred_fallthru
    _
  // Predicated region
  $region42: #{forward.1} parent=0 // pred_check
    _
  $region43: #{forward.1} parent=0 // pred_check_branch
    %2868 = sbr.rel (0) target = $region45
  $region44: #{forward.1} parent=0 // pred_region
    _
  $region45: #{forward.1} parent=0 // pred_fallthru
    _

</llo_original>
